<compile_context>
chip_gen: v5e
topology: v5e:2x2
jax: 0.10.0
libtpu: 0.0.40
codegen_flags: <defaults>
</compile_context>

<pallas_src>
import math
import functools
from dataclasses import dataclass

import jax
import jax.numpy as jnp
from jax.experimental import pallas as pl
from jax.experimental.pallas import tpu as pltpu


@dataclass
class GPTConfig:
    vocab_size: int = 128
    block_size: int = 16
    d_model: int = 32
    n_heads: int = 4
    n_layers: int = 2
    d_ff: int = 64
    ln_eps: float = 1e-5
    pad_token_id: int = 0
    eos_token_id: int = 1


LAYER_PARAM_ORDER = ("ln1_g", "ln1_b", "w_in", "b_in", "w_out", "b_out",
                     "ln2_g", "ln2_b", "w_ff1", "b_ff1", "w_ff2", "b_ff2")


def _vocab_tile(vocab_size: int) -> int:
    v128 = ((vocab_size + 127) // 128) * 128
    return min(512, v128)            # lane-dense lm_head tile (>=128)


# ---------------------------------------------------------------------------
# In-kernel math helpers (kept in f32: v5e has no bf16 VPU/EUP).
# ---------------------------------------------------------------------------
def _layernorm(v, g, b, eps):
    mu = jnp.mean(v, axis=-1, keepdims=True)
    var = jnp.mean((v - mu) ** 2, axis=-1, keepdims=True)   # biased var, like torch LN
    return (v - mu) * jax.lax.rsqrt(var + eps) * g + b


def _gelu_tanh(x):
    c = math.sqrt(2.0 / math.pi)
    return 0.5 * x * (1.0 + jnp.tanh(c * (x + 0.044715 * (x * x * x))))


# ---------------------------------------------------------------------------
# Fused full-network kernel.
# grid = (batch_blocks [parallel], n_layers + vocab_tiles [arbitrary]).
# Steps 0..L-1  : one GPT layer each (pre-LN MHA + pre-LN MLP), activation slab
#                 carried in VMEM scratch; final LN fused into step L-1.
# Steps L..     : lm_head matmul, one lane-dense vocab tile per step.
# ---------------------------------------------------------------------------
def gpt_full_kernel(x0_ref, pad_ref, lnf_g_ref, lnf_b_ref, lm_w_ref,
                    ln1_g_ref, ln1_b_ref, w_in_ref, b_in_ref,
                    w_out_ref, b_out_ref, ln2_g_ref, ln2_b_ref,
                    w_ff1_ref, b_ff1_ref, w_ff2_ref, b_ff2_ref,
                    logits_ref, h_ref, mask_ref,
                    *, n_heads, n_layers, bblk, seq, eps):
    step = pl.program_id(1)
    Bb, S, H = bblk, seq, n_heads
    BS, D = h_ref.shape
    dh = D // H
    scale = 1.0 / math.sqrt(dh)

    # ---- once per batch block: load embeddings + build additive mask --------
    @pl.when(step == 0)
    def _():
        h_ref[...] = x0_ref[...]
        row = jax.lax.broadcasted_iota(jnp.int32, (S, S), 0)
        col = jax.lax.broadcasted_iota(jnp.int32, (S, S), 1)
        causal = (col > row)[None, :, :]                 # (1, S, S)  True = future
        padk = pad_ref[...] > 0.5                        # (Bb, 1, S) True = pad key
        mask_ref[...] = jnp.where(jnp.logical_or(causal, padk),
                                  jnp.float32(-1e30), jnp.float32(0.0))

    # ---- transformer layers (steps 0..L-1) ----------------------------------
    @pl.when(step < n_layers)
    def _layer():
        x = h_ref[...]                                   # (BS, D) f32 resident slab

        # --- multi-head attention sub-layer ---
        ln1 = _layernorm(x, ln1_g_ref[0], ln1_b_ref[0], eps)
        qkv = jnp.dot(ln1.astype(jnp.bfloat16), w_in_ref[0],
                      preferred_element_type=jnp.float32) + b_in_ref[0]      # (BS, 3D)
        q = (qkv[:, :D] * scale).reshape(Bb, S, H, dh)
        k = qkv[:, D:2 * D].reshape(Bb, S, H, dh)
        v = qkv[:, 2 * D:].reshape(Bb, S, H, dh)
        # Fold (batch-block, head) into ONE batch axis -> two batched einsums,
        # no per-head lane slicing, no concatenate.
        qf = jnp.swapaxes(q, 1, 2).reshape(Bb * H, S, dh).astype(jnp.bfloat16)
        kf = jnp.swapaxes(k, 1, 2).reshape(Bb * H, S, dh).astype(jnp.bfloat16)
        vf = jnp.swapaxes(v, 1, 2).reshape(Bb * H, S, dh).astype(jnp.bfloat16)
        s = jnp.einsum('bqd,bkd->bqk', qf, kf,
                       preferred_element_type=jnp.float32)                   # (Bb*H,S,S)
        s = s.reshape(Bb, H, S, S) + mask_ref[...][:, None, :, :]
        s = s - jnp.max(s, axis=-1, keepdims=True)
        p = jnp.exp(s)
        # NOTE: fully padded query rows get a uniform softmax (PyTorch would NaN);
        # those rows never feed valid positions, so valid-token logits are unaffected.
        p = p * pl.reciprocal(jnp.sum(p, axis=-1, keepdims=True), approx=True)
        pf = p.reshape(Bb * H, S, S).astype(jnp.bfloat16)
        o = jnp.einsum('bqk,bkd->bqd', pf, vf,
                       preferred_element_type=jnp.float32)                   # (Bb*H,S,dh)
        attn = jnp.swapaxes(o.reshape(Bb, H, S, dh), 1, 2).reshape(BS, D)
        mha = jnp.dot(attn.astype(jnp.bfloat16), w_out_ref[0],
                      preferred_element_type=jnp.float32) + b_out_ref[0]
        h1 = x + mha                                     # residual (dropout == identity)

        # --- feed-forward sub-layer ---
        ln2 = _layernorm(h1, ln2_g_ref[0], ln2_b_ref[0], eps)
        ff = jnp.dot(ln2.astype(jnp.bfloat16), w_ff1_ref[0],
                     preferred_element_type=jnp.float32) + b_ff1_ref[0]
        ff = _gelu_tanh(ff)
        ff = jnp.dot(ff.astype(jnp.bfloat16), w_ff2_ref[0],
                     preferred_element_type=jnp.float32) + b_ff2_ref[0]
        h2 = h1 + ff                                     # residual (dropout == identity)
        h_ref[...] = h2

        @pl.when(step == n_layers - 1)
        def _():                                         # fuse final LayerNorm
            h_ref[...] = _layernorm(h2, lnf_g_ref[...], lnf_b_ref[...], eps)

    # ---- lm_head vocab tiles (steps L..L+n_vt-1) -----------------------------
    @pl.when(step >= n_layers)
    def _lm_head():
        logits_ref[...] = jnp.dot(h_ref[...].astype(jnp.bfloat16), lm_w_ref[...],
                                  preferred_element_type=jnp.float32)


def gpt_stack_and_head(x2, pad_f, params, cfg: GPTConfig, B, S, n_batch_blocks):
    BS, D = x2.shape
    L = cfg.n_layers
    Bblk = B // n_batch_blocks
    BSblk = Bblk * S
    lm_w = params["lm_head_w"]                # (D, Vp) bf16, pre-padded at init
    Vp = lm_w.shape[1]
    tv = _vocab_tile(cfg.vocab_size)
    assert Vp % tv == 0
    n_vt = Vp // tv
    stacked = [params["layers"][k] for k in LAYER_PARAM_ORDER]

    kern = functools.partial(gpt_full_kernel, n_heads=cfg.n_heads, n_layers=L,
                             bblk=Bblk, seq=S, eps=cfg.ln_eps)

    def layer_spec(p):
        # Clamp to the last layer during lm_head tail steps (block index unchanged
        # there, so no redundant weight DMA occurs).
        return pl.BlockSpec((1,) + tuple(p.shape[1:]),
                            lambda b, s: (jnp.minimum(s, L - 1), 0, 0))

    in_specs = [
        pl.BlockSpec((BSblk, D), lambda b, s: (b, 0)),          # embeddings (read at s==0)
        pl.BlockSpec((Bblk, 1, S), lambda b, s: (b, 0, 0)),     # key padding mask
        pl.BlockSpec((1, D), lambda b, s: (0, 0)),              # final LN gamma
        pl.BlockSpec((1, D), lambda b, s: (0, 0)),              # final LN beta
        pl.BlockSpec((D, tv),                                    # tied lm_head weight tile
                     lambda b, s: (0, jnp.maximum(s - L, 0))),
    ] + [layer_spec(p) for p in stacked]

    return pl.pallas_call(
        kern,
        out_shape=jax.ShapeDtypeStruct((BS, Vp), jnp.float32),
        grid=(n_batch_blocks, L + n_vt),
        in_specs=in_specs,
        # Only written during the tail steps; block index is constant across the
        # layer steps so the single writeback carries the valid data.
        out_specs=pl.BlockSpec((BSblk, tv), lambda b, s: (b, jnp.maximum(s - L, 0))),
        scratch_shapes=[pltpu.VMEM((BSblk, D), jnp.float32),    # activation carry
                        pltpu.VMEM((Bblk, S, S), jnp.float32)], # additive attn mask
        compiler_params=pltpu.CompilerParams(
            dimension_semantics=("parallel", "arbitrary"),
            vmem_limit_bytes=64 * 1024 * 1024),
    )(x2, pad_f, params["lnf_g"], params["lnf_b"], lm_w, *stacked)


# ---------------------------------------------------------------------------
# Parameter init (deterministic, BERT-style normal(0, 0.02) for weight matrices).
# Matmul weights stored pre-transposed, stacked over layers, and cast to bf16.
# ---------------------------------------------------------------------------
def init_params(key, cfg: GPTConfig):
    std = 0.02
    L, D, F, V = cfg.n_layers, cfg.d_model, cfg.d_ff, cfg.vocab_size
    keys = iter(jax.random.split(key, 2 + 4 * L))

    def nrm(shape):
        return std * jax.random.normal(next(keys), shape, jnp.float32)

    tok_emb = nrm((V, D))
    tv = _vocab_tile(V)
    Vp = ((V + tv - 1) // tv) * tv
    # Tied lm_head weight: transposed, vocab-padded, bf16 — done once at init.
    lm_w = jnp.zeros((D, Vp), jnp.float32).at[:, :V].set(tok_emb.T).astype(jnp.bfloat16)

    params = {
        "tok_emb": tok_emb,
        "lm_head_w": lm_w,
        "pos_emb": nrm((cfg.block_size, D)),
        "lnf_g": jnp.ones((1, D), jnp.float32),
        "lnf_b": jnp.zeros((1, D), jnp.float32),
    }
    per_layer = []
    for _ in range(L):
        per_layer.append(dict(
            ln1_g=jnp.ones((1, D), jnp.float32),
            ln1_b=jnp.zeros((1, D), jnp.float32),
            # PyTorch in_proj_weight is (3D, D); store transposed (D, 3D), bf16.
            w_in=nrm((3 * D, D)).T.astype(jnp.bfloat16),
            b_in=jnp.zeros((1, 3 * D), jnp.float32),
            w_out=nrm((D, D)).T.astype(jnp.bfloat16),
            b_out=jnp.zeros((1, D), jnp.float32),
            ln2_g=jnp.ones((1, D), jnp.float32),
            ln2_b=jnp.zeros((1, D), jnp.float32),
            w_ff1=nrm((F, D)).T.astype(jnp.bfloat16),
            b_ff1=jnp.zeros((1, F), jnp.float32),
            w_ff2=nrm((D, F)).T.astype(jnp.bfloat16),
            b_ff2=jnp.zeros((1, D), jnp.float32),
        ))
    params["layers"] = {k: jnp.stack([lp[k] for lp in per_layer], axis=0)
                        for k in LAYER_PARAM_ORDER}
    return params


# ---------------------------------------------------------------------------
# Full forward (glue: embeddings, masks, loss in plain JAX).
# ---------------------------------------------------------------------------
def cross_entropy(logits, targets, ignore_index):
    logp = jax.nn.log_softmax(logits, axis=-1)
    nll = -jnp.take_along_axis(logp, targets[..., None], axis=-1)[..., 0]
    valid = (targets != ignore_index).astype(jnp.float32)
    return jnp.sum(nll * valid) / jnp.maximum(jnp.sum(valid), 1.0)


def gpt_forward(params, ids, padding_mask, cfg: GPTConfig, targets=None):
    B, S = ids.shape
    assert S <= cfg.block_size
    assert cfg.d_model % cfg.n_heads == 0
    D = cfg.d_model
    x = jnp.take(params["tok_emb"], ids, axis=0) + params["pos_emb"][:S][None, :, :]
    # embeddings dropout: identity (deterministic forward)
    x2 = x.reshape(B * S, D).astype(jnp.float32)
    pad_f = padding_mask.astype(jnp.float32).reshape(B, 1, S)     # 1.0 = masked (pad key)
    nb = 2 if (B % 2 == 0) else 1        # split batch over v7x's 2 TensorCores
    logits_p = gpt_stack_and_head(x2, pad_f, params, cfg, B, S, nb)   # (B*S, Vp)
    logits = logits_p[:, :cfg.vocab_size].reshape(B, S, cfg.vocab_size)
    loss = None
    if targets is not None:
        loss = cross_entropy(logits, targets, cfg.pad_token_id)
    return logits, loss


if __name__ == "__main__":
    cfg = GPTConfig(vocab_size=128, block_size=16, d_model=32, n_heads=4,
                    n_layers=2, d_ff=64)

    root = jax.random.PRNGKey(0)
    k_params, k_ids, k_tgt = jax.random.split(root, 3)
    params = init_params(k_params, cfg)

    B, S = 2, 8
    ids = jax.random.randint(k_ids, (B, S), 2, cfg.vocab_size, dtype=jnp.int32)
    ids = ids.at[0, -2:].set(cfg.pad_token_id)          # pad tail of sequence 0
    padding_mask = (ids == cfg.pad_token_id)
    targets = jax.random.randint(k_tgt, (B, S), 2, cfg.vocab_size, dtype=jnp.int32)

    logits, loss = gpt_forward(params, ids, padding_mask, cfg, targets=targets)
    logits = jax.block_until_ready(logits)
    loss = jax.block_until_ready(loss)

    assert logits.shape == (B, S, cfg.vocab_size)
    assert bool(jnp.all(jnp.isfinite(logits))) and bool(jnp.isfinite(loss))
    print("KERNEL_OK")
</pallas_src>

<mosaic_0001>
module attributes {stable_mosaic.version = 11 : i64} {
  func.func @gpt_full_kernel(%arg0: i32, %arg1: i32, %arg2: memref<8x32xf32, #tpu.memory_space<vmem>>, %arg3: memref<1x1x8xf32, #tpu.memory_space<vmem>>, %arg4: memref<1x32xf32, #tpu.memory_space<vmem>>, %arg5: memref<1x32xf32, #tpu.memory_space<vmem>>, %arg6: memref<32x128xbf16, #tpu.memory_space<vmem>>, %arg7: memref<1x1x32xf32, #tpu.memory_space<vmem>>, %arg8: memref<1x1x32xf32, #tpu.memory_space<vmem>>, %arg9: memref<1x32x96xbf16, #tpu.memory_space<vmem>>, %arg10: memref<1x1x96xf32, #tpu.memory_space<vmem>>, %arg11: memref<1x32x32xbf16, #tpu.memory_space<vmem>>, %arg12: memref<1x1x32xf32, #tpu.memory_space<vmem>>, %arg13: memref<1x1x32xf32, #tpu.memory_space<vmem>>, %arg14: memref<1x1x32xf32, #tpu.memory_space<vmem>>, %arg15: memref<1x32x64xbf16, #tpu.memory_space<vmem>>, %arg16: memref<1x1x64xf32, #tpu.memory_space<vmem>>, %arg17: memref<1x64x32xbf16, #tpu.memory_space<vmem>>, %arg18: memref<1x1x32xf32, #tpu.memory_space<vmem>>, %arg19: memref<8x128xf32, #tpu.memory_space<vmem>>, %arg20: memref<8x32xf32, #tpu.memory_space<vmem>>, %arg21: memref<1x8x8xf32, #tpu.memory_space<vmem>>) attributes {dimension_semantics = [#tpu.dimension_semantics<parallel>, #tpu.dimension_semantics<arbitrary>], iteration_bounds = array<i64: 2, 3>, scalar_prefetch = 0 : i64, scratch_operands = 2 : i64, tpu.core_type = #tpu.core_type<tc>, window_params = [{transform_indices = @transform_0, window_bounds = array<i64: 8, 32>}, {transform_indices = @transform_1, window_bounds = array<i64: 1, 1, 8>}, {pipeline_mode = #tpu.pipeline_mode<synchronous>, transform_indices = @transform_2, window_bounds = array<i64: 1, 32>}, {pipeline_mode = #tpu.pipeline_mode<synchronous>, transform_indices = @transform_3, window_bounds = array<i64: 1, 32>}, {transform_indices = @transform_4, window_bounds = array<i64: 32, 128>}, {transform_indices = @transform_5, window_bounds = array<i64: 1, 1, 32>}, {transform_indices = @transform_6, window_bounds = array<i64: 1, 1, 32>}, {transform_indices = @transform_7, window_bounds = array<i64: 1, 32, 96>}, {transform_indices = @transform_8, window_bounds = array<i64: 1, 1, 96>}, {transform_indices = @transform_9, window_bounds = array<i64: 1, 32, 32>}, {transform_indices = @transform_10, window_bounds = array<i64: 1, 1, 32>}, {transform_indices = @transform_11, window_bounds = array<i64: 1, 1, 32>}, {transform_indices = @transform_12, window_bounds = array<i64: 1, 1, 32>}, {transform_indices = @transform_13, window_bounds = array<i64: 1, 32, 64>}, {transform_indices = @transform_14, window_bounds = array<i64: 1, 1, 64>}, {transform_indices = @transform_15, window_bounds = array<i64: 1, 64, 32>}, {transform_indices = @transform_16, window_bounds = array<i64: 1, 1, 32>}, {transform_indices = @transform_17, window_bounds = array<i64: 8, 128>}]} {
    %c0_i32 = arith.constant 0 : i32
    %0 = arith.cmpi eq, %arg1, %c0_i32 : i32
    %1 = arith.extui %0 : i1 to i32
    %c0_i32_0 = arith.constant 0 : i32
    %2 = arith.cmpi ne, %1, %c0_i32_0 : i32
    scf.if %2 {
      %c0 = arith.constant 0 : index
      %c0_4 = arith.constant 0 : index
      %9 = vector.load %arg2[%c0, %c0_4] : memref<8x32xf32, #tpu.memory_space<vmem>>, vector<8x32xf32>
      %c0_5 = arith.constant 0 : index
      %c0_6 = arith.constant 0 : index
      %10 = vector.load %arg20[%c0_5, %c0_6] : memref<8x32xf32, #tpu.memory_space<vmem>>, vector<8x32xf32>
      tpu.vector_store %arg20[%c0_5, %c0_6], %9 {strides = array<i32>} : memref<8x32xf32, #tpu.memory_space<vmem>>, vector<8x32xf32>,
      %11 = tpu.iota {dimensions = array<i32: 0>} : vector<8x8xi32>
      %12 = tpu.iota {dimensions = array<i32: 1>} : vector<8x8xi32>
      %13 = arith.cmpi sgt, %12, %11 : vector<8x8xi32>
      %14 = vector.shape_cast %13 : vector<8x8xi1> to vector<1x8x8xi1>
      %c0_7 = arith.constant 0 : index
      %c0_8 = arith.constant 0 : index
      %c0_9 = arith.constant 0 : index
      %15 = vector.load %arg3[%c0_7, %c0_8, %c0_9] : memref<1x1x8xf32, #tpu.memory_space<vmem>>, vector<1x1x8xf32>
      %cst = arith.constant 5.000000e-01 : f32
      %16 = vector.broadcast %cst : f32 to vector<1x1x8xf32>
      %17 = arith.cmpf ogt, %15, %16 : vector<1x1x8xf32>
      %18 = vector.broadcast %17 : vector<1x1x8xi1> to vector<1x8x8xi1>
      %19 = arith.ori %14, %18 : vector<1x8x8xi1>
      %cst_10 = arith.constant -1.000000e+30 : f32
      %cst_11 = arith.constant 0.000000e+00 : f32
      %20 = vector.broadcast %cst_10 : f32 to vector<1x8x8xf32>
      %21 = vector.broadcast %cst_11 : f32 to vector<1x8x8xf32>
      %22 = arith.select %19, %20, %21 : vector<1x8x8xi1>, vector<1x8x8xf32>
      %c0_12 = arith.constant 0 : index
      %c0_13 = arith.constant 0 : index
      %c0_14 = arith.constant 0 : index
      %23 = vector.load %arg21[%c0_12, %c0_13, %c0_14] : memref<1x8x8xf32, #tpu.memory_space<vmem>>, vector<1x8x8xf32>
      tpu.vector_store %arg21[%c0_12, %c0_13, %c0_14], %22 {strides = array<i32>} : memref<1x8x8xf32, #tpu.memory_space<vmem>>, vector<1x8x8xf32>,
    } else {
    }
    %c2_i32 = arith.constant 2 : i32
    %3 = arith.cmpi slt, %arg1, %c2_i32 : i32
    %4 = arith.extui %3 : i1 to i32
    %c0_i32_1 = arith.constant 0 : i32
    %5 = arith.cmpi ne, %4, %c0_i32_1 : i32
    scf.if %5 {
      %c0 = arith.constant 0 : index
      %c0_4 = arith.constant 0 : index
      %9 = vector.load %arg20[%c0, %c0_4] : memref<8x32xf32, #tpu.memory_space<vmem>>, vector<8x32xf32>
      %c0_5 = arith.constant 0 : index
      %c0_6 = arith.constant 0 : index
      %c0_7 = arith.constant 0 : index
      %10 = vector.load %arg7[%c0_5, %c0_6, %c0_7] : memref<1x1x32xf32, #tpu.memory_space<vmem>>, vector<1x1x32xf32>
      %11 = vector.shape_cast %10 : vector<1x1x32xf32> to vector<1x32xf32>
      %c0_8 = arith.constant 0 : index
      %c0_9 = arith.constant 0 : index
      %c0_10 = arith.constant 0 : index
      %12 = vector.load %arg8[%c0_8, %c0_9, %c0_10] : memref<1x1x32xf32, #tpu.memory_space<vmem>>, vector<1x1x32xf32>
      %13 = vector.shape_cast %12 : vector<1x1x32xf32> to vector<1x32xf32>
      %cst = arith.constant dense<0.000000e+00> : vector<8xf32>
      %14 = vector.multi_reduction <add>, %9, %cst [1] : vector<8x32xf32> to vector<8xf32>
      %15 = vector.shape_cast %14 : vector<8xf32> to vector<8x1xf32>
      %cst_11 = arith.constant 3.200000e+01 : f32
      %16 = vector.broadcast %cst_11 : f32 to vector<8x1xf32>
      %17 = arith.divf %15, %16 : vector<8x1xf32>
      %18 = vector.broadcast %17 : vector<8x1xf32> to vector<8x32xf32>
      %19 = arith.subf %9, %18 : vector<8x32xf32>
      %20 = arith.mulf %19, %19 : vector<8x32xf32>
      %cst_12 = arith.constant dense<0.000000e+00> : vector<8xf32>
      %21 = vector.multi_reduction <add>, %20, %cst_12 [1] : vector<8x32xf32> to vector<8xf32>
      %22 = vector.shape_cast %21 : vector<8xf32> to vector<8x1xf32>
      %cst_13 = arith.constant 3.200000e+01 : f32
      %23 = vector.broadcast %cst_13 : f32 to vector<8x1xf32>
      %24 = arith.divf %22, %23 : vector<8x1xf32>
      %25 = vector.broadcast %17 : vector<8x1xf32> to vector<8x32xf32>
      %26 = arith.subf %9, %25 : vector<8x32xf32>
      %cst_14 = arith.constant 9.99999974E-6 : f32
      %27 = vector.broadcast %cst_14 : f32 to vector<8x1xf32>
      %28 = arith.addf %24, %27 : vector<8x1xf32>
      %29 = math.rsqrt %28 : vector<8x1xf32>
      %30 = vector.broadcast %29 : vector<8x1xf32> to vector<8x32xf32>
      %31 = arith.mulf %26, %30 : vector<8x32xf32>
      %32 = vector.broadcast %11 : vector<1x32xf32> to vector<8x32xf32>
      %33 = arith.mulf %31, %32 : vector<8x32xf32>
      %34 = vector.broadcast %13 : vector<1x32xf32> to vector<8x32xf32>
      %35 = arith.addf %33, %34 : vector<8x32xf32>
      %36 = arith.truncf %35 : vector<8x32xf32> to vector<8x32xbf16>
      %c0_15 = arith.constant 0 : index
      %c0_16 = arith.constant 0 : index
      %c0_17 = arith.constant 0 : index
      %37 = vector.load %arg9[%c0_15, %c0_16, %c0_17] : memref<1x32x96xbf16, #tpu.memory_space<vmem>>, vector<1x32x96xbf16>
      %38 = vector.shape_cast %37 : vector<1x32x96xbf16> to vector<32x96xbf16>
      %cst_18 = arith.constant dense<0.000000e+00> : vector<8x96xf32>
      %39 = tpu.matmul %36, %38, %cst_18 {dimension_numbers = #tpu.dot_dimension_numbers<[1], [0], [0], [1], [0, 0, 1, 1], [], []>} : vector<8x32xbf16>, vector<32x96xbf16>, vector<8x96xf32> -> vector<8x96xf32>
      %c0_19 = arith.constant 0 : index
      %c0_20 = arith.constant 0 : index
      %c0_21 = arith.constant 0 : index
      %40 = vector.load %arg10[%c0_19, %c0_20, %c0_21] : memref<1x1x96xf32, #tpu.memory_space<vmem>>, vector<1x1x96xf32>
      %41 = vector.shape_cast %40 : vector<1x1x96xf32> to vector<1x96xf32>
      %42 = vector.broadcast %41 : vector<1x96xf32> to vector<8x96xf32>
      %43 = arith.addf %39, %42 : vector<8x96xf32>
      %44 = vector.extract_strided_slice %43 {offsets = [0, 0], sizes = [8, 32], strides = [1, 1]} : vector<8x96xf32> to vector<8x32xf32>
      %cst_22 = arith.constant 0.353553385 : f32
      %45 = vector.broadcast %cst_22 : f32 to vector<8x32xf32>
      %46 = arith.mulf %44, %45 : vector<8x32xf32>
      %47 = vector.shape_cast %46 : vector<8x32xf32> to vector<1x8x4x8xf32>
      %48 = vector.extract_strided_slice %43 {offsets = [0, 32], sizes = [8, 32], strides = [1, 1]} : vector<8x96xf32> to vector<8x32xf32>
      %49 = vector.shape_cast %48 : vector<8x32xf32> to vector<1x8x4x8xf32>
      %50 = vector.extract_strided_slice %43 {offsets = [0, 64], sizes = [8, 32], strides = [1, 1]} : vector<8x96xf32> to vector<8x32xf32>
      %51 = vector.shape_cast %50 : vector<8x32xf32> to vector<1x8x4x8xf32>
      %52 = tpu.transpose %47, [0, 2, 1, 3] : vector<1x8x4x8xf32> -> vector<1x4x8x8xf32>
      %53 = vector.shape_cast %52 : vector<1x4x8x8xf32> to vector<4x8x8xf32>
      %54 = arith.truncf %53 : vector<4x8x8xf32> to vector<4x8x8xbf16>
      %55 = tpu.transpose %49, [0, 2, 1, 3] : vector<1x8x4x8xf32> -> vector<1x4x8x8xf32>
      %56 = vector.shape_cast %55 : vector<1x4x8x8xf32> to vector<4x8x8xf32>
      %57 = arith.truncf %56 : vector<4x8x8xf32> to vector<4x8x8xbf16>
      %58 = tpu.transpose %51, [0, 2, 1, 3] : vector<1x8x4x8xf32> -> vector<1x4x8x8xf32>
      %59 = vector.shape_cast %58 : vector<1x4x8x8xf32> to vector<4x8x8xf32>
      %60 = arith.truncf %59 : vector<4x8x8xf32> to vector<4x8x8xbf16>
      "tpu.trace_start"() <{level = 10 : i32, message = "bqd,bkd->bqk"}> : () -> ()
      %cst_23 = arith.constant dense<0.000000e+00> : vector<4x8x8xf32>
      %61 = tpu.matmul %54, %57, %cst_23 {dimension_numbers = #tpu.dot_dimension_numbers<[2], [2], [1], [1], [0, 0, 0, 1, 1, 1], [0], [0]>} : vector<4x8x8xbf16>, vector<4x8x8xbf16>, vector<4x8x8xf32> -> vector<4x8x8xf32>
      "tpu.trace_stop"() : () -> ()
      %62 = vector.shape_cast %61 : vector<4x8x8xf32> to vector<1x4x8x8xf32>
      %c0_24 = arith.constant 0 : index
      %c0_25 = arith.constant 0 : index
      %c0_26 = arith.constant 0 : index
      %63 = vector.load %arg21[%c0_24, %c0_25, %c0_26] : memref<1x8x8xf32, #tpu.memory_space<vmem>>, vector<1x8x8xf32>
      %64 = vector.shape_cast %63 : vector<1x8x8xf32> to vector<1x1x8x8xf32>
      %65 = vector.broadcast %64 : vector<1x1x8x8xf32> to vector<1x4x8x8xf32>
      %66 = arith.addf %62, %65 : vector<1x4x8x8xf32>
      %cst_27 = arith.constant dense<0xFF800000> : vector<1x4x8xf32>
      %67 = vector.multi_reduction <maximumf>, %66, %cst_27 [3] : vector<1x4x8x8xf32> to vector<1x4x8xf32>
      %68 = vector.shape_cast %67 : vector<1x4x8xf32> to vector<1x4x8x1xf32>
      %69 = vector.broadcast %68 : vector<1x4x8x1xf32> to vector<1x4x8x8xf32>
      %70 = arith.subf %66, %69 : vector<1x4x8x8xf32>
      %71 = math.exp %70 : vector<1x4x8x8xf32>
      %cst_28 = arith.constant dense<0.000000e+00> : vector<1x4x8xf32>
      %72 = vector.multi_reduction <add>, %71, %cst_28 [3] : vector<1x4x8x8xf32> to vector<1x4x8xf32>
      %73 = vector.shape_cast %72 : vector<1x4x8xf32> to vector<1x4x8x1xf32>
      %74 = tpu.reciprocal %73 {approx = true} : vector<1x4x8x1xf32> -> vector<1x4x8x1xf32>
      %75 = vector.broadcast %74 : vector<1x4x8x1xf32> to vector<1x4x8x8xf32>
      %76 = arith.mulf %71, %75 : vector<1x4x8x8xf32>
      %77 = vector.shape_cast %76 : vector<1x4x8x8xf32> to vector<4x8x8xf32>
      %78 = arith.truncf %77 : vector<4x8x8xf32> to vector<4x8x8xbf16>
      "tpu.trace_start"() <{level = 10 : i32, message = "bqk,bkd->bqd"}> : () -> ()
      %cst_29 = arith.constant dense<0.000000e+00> : vector<4x8x8xf32>
      %79 = tpu.matmul %78, %60, %cst_29 {dimension_numbers = #tpu.dot_dimension_numbers<[2], [1], [1], [2], [0, 0, 0, 1, 1, 2], [0], [0]>} : vector<4x8x8xbf16>, vector<4x8x8xbf16>, vector<4x8x8xf32> -> vector<4x8x8xf32>
      "tpu.trace_stop"() : () -> ()
      %80 = vector.shape_cast %79 : vector<4x8x8xf32> to vector<1x4x8x8xf32>
      %81 = tpu.transpose %80, [0, 2, 1, 3] : vector<1x4x8x8xf32> -> vector<1x8x4x8xf32>
      %82 = vector.shape_cast %81 : vector<1x8x4x8xf32> to vector<8x32xf32>
      %83 = arith.truncf %82 : vector<8x32xf32> to vector<8x32xbf16>
      %c0_30 = arith.constant 0 : index
      %c0_31 = arith.constant 0 : index
      %c0_32 = arith.constant 0 : index
      %84 = vector.load %arg11[%c0_30, %c0_31, %c0_32] : memref<1x32x32xbf16, #tpu.memory_space<vmem>>, vector<1x32x32xbf16>
      %85 = vector.shape_cast %84 : vector<1x32x32xbf16> to vector<32x32xbf16>
      %cst_33 = arith.constant dense<0.000000e+00> : vector<8x32xf32>
      %86 = tpu.matmul %83, %85, %cst_33 {dimension_numbers = #tpu.dot_dimension_numbers<[1], [0], [0], [1], [0, 0, 1, 1], [], []>} : vector<8x32xbf16>, vector<32x32xbf16>, vector<8x32xf32> -> vector<8x32xf32>
      %c0_34 = arith.constant 0 : index
      %c0_35 = arith.constant 0 : index
      %c0_36 = arith.constant 0 : index
      %87 = vector.load %arg12[%c0_34, %c0_35, %c0_36] : memref<1x1x32xf32, #tpu.memory_space<vmem>>, vector<1x1x32xf32>
      %88 = vector.shape_cast %87 : vector<1x1x32xf32> to vector<1x32xf32>
      %89 = vector.broadcast %88 : vector<1x32xf32> to vector<8x32xf32>
      %90 = arith.addf %86, %89 : vector<8x32xf32>
      %91 = arith.addf %9, %90 : vector<8x32xf32>
      %c0_37 = arith.constant 0 : index
      %c0_38 = arith.constant 0 : index
      %c0_39 = arith.constant 0 : index
      %92 = vector.load %arg13[%c0_37, %c0_38, %c0_39] : memref<1x1x32xf32, #tpu.memory_space<vmem>>, vector<1x1x32xf32>
      %93 = vector.shape_cast %92 : vector<1x1x32xf32> to vector<1x32xf32>
      %c0_40 = arith.constant 0 : index
      %c0_41 = arith.constant 0 : index
      %c0_42 = arith.constant 0 : index
      %94 = vector.load %arg14[%c0_40, %c0_41, %c0_42] : memref<1x1x32xf32, #tpu.memory_space<vmem>>, vector<1x1x32xf32>
      %95 = vector.shape_cast %94 : vector<1x1x32xf32> to vector<1x32xf32>
      %cst_43 = arith.constant dense<0.000000e+00> : vector<8xf32>
      %96 = vector.multi_reduction <add>, %91, %cst_43 [1] : vector<8x32xf32> to vector<8xf32>
      %97 = vector.shape_cast %96 : vector<8xf32> to vector<8x1xf32>
      %cst_44 = arith.constant 3.200000e+01 : f32
      %98 = vector.broadcast %cst_44 : f32 to vector<8x1xf32>
      %99 = arith.divf %97, %98 : vector<8x1xf32>
      %100 = vector.broadcast %99 : vector<8x1xf32> to vector<8x32xf32>
      %101 = arith.subf %91, %100 : vector<8x32xf32>
      %102 = arith.mulf %101, %101 : vector<8x32xf32>
      %cst_45 = arith.constant dense<0.000000e+00> : vector<8xf32>
      %103 = vector.multi_reduction <add>, %102, %cst_45 [1] : vector<8x32xf32> to vector<8xf32>
      %104 = vector.shape_cast %103 : vector<8xf32> to vector<8x1xf32>
      %cst_46 = arith.constant 3.200000e+01 : f32
      %105 = vector.broadcast %cst_46 : f32 to vector<8x1xf32>
      %106 = arith.divf %104, %105 : vector<8x1xf32>
      %107 = vector.broadcast %99 : vector<8x1xf32> to vector<8x32xf32>
      %108 = arith.subf %91, %107 : vector<8x32xf32>
      %cst_47 = arith.constant 9.99999974E-6 : f32
      %109 = vector.broadcast %cst_47 : f32 to vector<8x1xf32>
      %110 = arith.addf %106, %109 : vector<8x1xf32>
      %111 = math.rsqrt %110 : vector<8x1xf32>
      %112 = vector.broadcast %111 : vector<8x1xf32> to vector<8x32xf32>
      %113 = arith.mulf %108, %112 : vector<8x32xf32>
      %114 = vector.broadcast %93 : vector<1x32xf32> to vector<8x32xf32>
      %115 = arith.mulf %113, %114 : vector<8x32xf32>
      %116 = vector.broadcast %95 : vector<1x32xf32> to vector<8x32xf32>
      %117 = arith.addf %115, %116 : vector<8x32xf32>
      %118 = arith.truncf %117 : vector<8x32xf32> to vector<8x32xbf16>
      %c0_48 = arith.constant 0 : index
      %c0_49 = arith.constant 0 : index
      %c0_50 = arith.constant 0 : index
      %119 = vector.load %arg15[%c0_48, %c0_49, %c0_50] : memref<1x32x64xbf16, #tpu.memory_space<vmem>>, vector<1x32x64xbf16>
      %120 = vector.shape_cast %119 : vector<1x32x64xbf16> to vector<32x64xbf16>
      %cst_51 = arith.constant dense<0.000000e+00> : vector<8x64xf32>
      %121 = tpu.matmul %118, %120, %cst_51 {dimension_numbers = #tpu.dot_dimension_numbers<[1], [0], [0], [1], [0, 0, 1, 1], [], []>} : vector<8x32xbf16>, vector<32x64xbf16>, vector<8x64xf32> -> vector<8x64xf32>
      %c0_52 = arith.constant 0 : index
      %c0_53 = arith.constant 0 : index
      %c0_54 = arith.constant 0 : index
      %122 = vector.load %arg16[%c0_52, %c0_53, %c0_54] : memref<1x1x64xf32, #tpu.memory_space<vmem>>, vector<1x1x64xf32>
      %123 = vector.shape_cast %122 : vector<1x1x64xf32> to vector<1x64xf32>
      %124 = vector.broadcast %123 : vector<1x64xf32> to vector<8x64xf32>
      %125 = arith.addf %121, %124 : vector<8x64xf32>
      %cst_55 = arith.constant 5.000000e-01 : f32
      %126 = vector.broadcast %cst_55 : f32 to vector<8x64xf32>
      %127 = arith.mulf %126, %125 : vector<8x64xf32>
      %128 = arith.mulf %125, %125 : vector<8x64xf32>
      %129 = arith.mulf %128, %125 : vector<8x64xf32>
      %cst_56 = arith.constant 4.471500e-02 : f32
      %130 = vector.broadcast %cst_56 : f32 to vector<8x64xf32>
      %131 = arith.mulf %130, %129 : vector<8x64xf32>
      %132 = arith.addf %125, %131 : vector<8x64xf32>
      %cst_57 = arith.constant 0.797884583 : f32
      %133 = vector.broadcast %cst_57 : f32 to vector<8x64xf32>
      %134 = arith.mulf %133, %132 : vector<8x64xf32>
      %135 = math.tanh %134 : vector<8x64xf32>
      %cst_58 = arith.constant 1.000000e+00 : f32
      %136 = vector.broadcast %cst_58 : f32 to vector<8x64xf32>
      %137 = arith.addf %136, %135 : vector<8x64xf32>
      %138 = arith.mulf %127, %137 : vector<8x64xf32>
      %139 = arith.truncf %138 : vector<8x64xf32> to vector<8x64xbf16>
      %c0_59 = arith.constant 0 : index
      %c0_60 = arith.constant 0 : index
      %c0_61 = arith.constant 0 : index
      %140 = vector.load %arg17[%c0_59, %c0_60, %c0_61] : memref<1x64x32xbf16, #tpu.memory_space<vmem>>, vector<1x64x32xbf16>
      %141 = vector.shape_cast %140 : vector<1x64x32xbf16> to vector<64x32xbf16>
      %cst_62 = arith.constant dense<0.000000e+00> : vector<8x32xf32>
      %142 = tpu.matmul %139, %141, %cst_62 {dimension_numbers = #tpu.dot_dimension_numbers<[1], [0], [0], [1], [0, 0, 1, 1], [], []>} : vector<8x64xbf16>, vector<64x32xbf16>, vector<8x32xf32> -> vector<8x32xf32>
      %c0_63 = arith.constant 0 : index
      %c0_64 = arith.constant 0 : index
      %c0_65 = arith.constant 0 : index
      %143 = vector.load %arg18[%c0_63, %c0_64, %c0_65] : memref<1x1x32xf32, #tpu.memory_space<vmem>>, vector<1x1x32xf32>
      %144 = vector.shape_cast %143 : vector<1x1x32xf32> to vector<1x32xf32>
      %145 = vector.broadcast %144 : vector<1x32xf32> to vector<8x32xf32>
      %146 = arith.addf %142, %145 : vector<8x32xf32>
      %147 = arith.addf %91, %146 : vector<8x32xf32>
      %c0_66 = arith.constant 0 : index
      %c0_67 = arith.constant 0 : index
      %148 = vector.load %arg20[%c0_66, %c0_67] : memref<8x32xf32, #tpu.memory_space<vmem>>, vector<8x32xf32>
      tpu.vector_store %arg20[%c0_66, %c0_67], %147 {strides = array<i32>} : memref<8x32xf32, #tpu.memory_space<vmem>>, vector<8x32xf32>,
      %c1_i32 = arith.constant 1 : i32
      %149 = arith.cmpi eq, %arg1, %c1_i32 : i32
      %150 = arith.extui %149 : i1 to i32
      %c0_i32_68 = arith.constant 0 : i32
      %151 = arith.cmpi ne, %150, %c0_i32_68 : i32
      scf.if %151 {
        %c0_69 = arith.constant 0 : index
        %c0_70 = arith.constant 0 : index
        %152 = vector.load %arg4[%c0_69, %c0_70] : memref<1x32xf32, #tpu.memory_space<vmem>>, vector<1x32xf32>
        %c0_71 = arith.constant 0 : index
        %c0_72 = arith.constant 0 : index
        %153 = vector.load %arg5[%c0_71, %c0_72] : memref<1x32xf32, #tpu.memory_space<vmem>>, vector<1x32xf32>
        %cst_73 = arith.constant dense<0.000000e+00> : vector<8xf32>
        %154 = vector.multi_reduction <add>, %147, %cst_73 [1] : vector<8x32xf32> to vector<8xf32>
        %155 = vector.shape_cast %154 : vector<8xf32> to vector<8x1xf32>
        %cst_74 = arith.constant 3.200000e+01 : f32
        %156 = vector.broadcast %cst_74 : f32 to vector<8x1xf32>
        %157 = arith.divf %155, %156 : vector<8x1xf32>
        %158 = vector.broadcast %157 : vector<8x1xf32> to vector<8x32xf32>
        %159 = arith.subf %147, %158 : vector<8x32xf32>
        %160 = arith.mulf %159, %159 : vector<8x32xf32>
        %cst_75 = arith.constant dense<0.000000e+00> : vector<8xf32>
        %161 = vector.multi_reduction <add>, %160, %cst_75 [1] : vector<8x32xf32> to vector<8xf32>
        %162 = vector.shape_cast %161 : vector<8xf32> to vector<8x1xf32>
        %cst_76 = arith.constant 3.200000e+01 : f32
        %163 = vector.broadcast %cst_76 : f32 to vector<8x1xf32>
        %164 = arith.divf %162, %163 : vector<8x1xf32>
        %165 = vector.broadcast %157 : vector<8x1xf32> to vector<8x32xf32>
        %166 = arith.subf %147, %165 : vector<8x32xf32>
        %cst_77 = arith.constant 9.99999974E-6 : f32
        %167 = vector.broadcast %cst_77 : f32 to vector<8x1xf32>
        %168 = arith.addf %164, %167 : vector<8x1xf32>
        %169 = math.rsqrt %168 : vector<8x1xf32>
        %170 = vector.broadcast %169 : vector<8x1xf32> to vector<8x32xf32>
        %171 = arith.mulf %166, %170 : vector<8x32xf32>
        %172 = vector.broadcast %152 : vector<1x32xf32> to vector<8x32xf32>
        %173 = arith.mulf %171, %172 : vector<8x32xf32>
        %174 = vector.broadcast %153 : vector<1x32xf32> to vector<8x32xf32>
        %175 = arith.addf %173, %174 : vector<8x32xf32>
        %c0_78 = arith.constant 0 : index
        %c0_79 = arith.constant 0 : index
        %176 = vector.load %arg20[%c0_78, %c0_79] : memref<8x32xf32, #tpu.memory_space<vmem>>, vector<8x32xf32>
        tpu.vector_store %arg20[%c0_78, %c0_79], %175 {strides = array<i32>} : memref<8x32xf32, #tpu.memory_space<vmem>>, vector<8x32xf32>,
      } else {
      }
    } else {
    }
    %c2_i32_2 = arith.constant 2 : i32
    %6 = arith.cmpi sge, %arg1, %c2_i32_2 : i32
    %7 = arith.extui %6 : i1 to i32
    %c0_i32_3 = arith.constant 0 : i32
    %8 = arith.cmpi ne, %7, %c0_i32_3 : i32
    scf.if %8 {
      %c0 = arith.constant 0 : index
      %c0_4 = arith.constant 0 : index
      %9 = vector.load %arg20[%c0, %c0_4] : memref<8x32xf32, #tpu.memory_space<vmem>>, vector<8x32xf32>
      %10 = arith.truncf %9 : vector<8x32xf32> to vector<8x32xbf16>
      %c0_5 = arith.constant 0 : index
      %c0_6 = arith.constant 0 : index
      %11 = vector.load %arg6[%c0_5, %c0_6] : memref<32x128xbf16, #tpu.memory_space<vmem>>, vector<32x128xbf16>
      %cst = arith.constant dense<0.000000e+00> : vector<8x128xf32>
      %12 = tpu.matmul %10, %11, %cst {dimension_numbers = #tpu.dot_dimension_numbers<[1], [0], [0], [1], [0, 0, 1, 1], [], []>} : vector<8x32xbf16>, vector<32x128xbf16>, vector<8x128xf32> -> vector<8x128xf32>
      %c0_7 = arith.constant 0 : index
      %c0_8 = arith.constant 0 : index
      %13 = vector.load %arg19[%c0_7, %c0_8] : memref<8x128xf32, #tpu.memory_space<vmem>>, vector<8x128xf32>
      tpu.vector_store %arg19[%c0_7, %c0_8], %12 {strides = array<i32>} : memref<8x128xf32, #tpu.memory_space<vmem>>, vector<8x128xf32>,
    } else {
    }
    return
  }
  func.func @transform_0(%arg0: i32, %arg1: i32) -> (i32, i32) {
    %c0_i32 = arith.constant 0 : i32
    %c0_i32_0 = arith.constant 0 : i32
    return %arg0, %c0_i32 : i32, i32
  }
  func.func @transform_1(%arg0: i32, %arg1: i32) -> (i32, i32, i32) {
    %c0_i32 = arith.constant 0 : i32
    %c0_i32_0 = arith.constant 0 : i32
    %c0_i32_1 = arith.constant 0 : i32
    return %arg0, %c0_i32, %c0_i32_0 : i32, i32, i32
  }
  func.func @transform_2(%arg0: i32, %arg1: i32) -> (i32, i32) {
    %c0_i32 = arith.constant 0 : i32
    %c0_i32_0 = arith.constant 0 : i32
    %c0_i32_1 = arith.constant 0 : i32
    return %c0_i32, %c0_i32_0 : i32, i32
  }
  func.func @transform_3(%arg0: i32, %arg1: i32) -> (i32, i32) {
    %c0_i32 = arith.constant 0 : i32
    %c0_i32_0 = arith.constant 0 : i32
    %c0_i32_1 = arith.constant 0 : i32
    return %c0_i32, %c0_i32_0 : i32, i32
  }
  func.func @transform_4(%arg0: i32, %arg1: i32) -> (i32, i32) {
    %c2_i32 = arith.constant 2 : i32
    %0 = arith.subi %arg1, %c2_i32 : i32
    %c0_i32 = arith.constant 0 : i32
    %1 = arith.maxsi %0, %c0_i32 : i32
    %c0_i32_0 = arith.constant 0 : i32
    %c0_i32_1 = arith.constant 0 : i32
    return %c0_i32_0, %1 : i32, i32
  }
  func.func @transform_5(%arg0: i32, %arg1: i32) -> (i32, i32, i32) {
    %c1_i32 = arith.constant 1 : i32
    %0 = arith.minsi %arg1, %c1_i32 : i32
    %c0_i32 = arith.constant 0 : i32
    %c0_i32_0 = arith.constant 0 : i32
    %c0_i32_1 = arith.constant 0 : i32
    return %0, %c0_i32, %c0_i32_0 : i32, i32, i32
  }
  func.func @transform_6(%arg0: i32, %arg1: i32) -> (i32, i32, i32) {
    %c1_i32 = arith.constant 1 : i32
    %0 = arith.minsi %arg1, %c1_i32 : i32
    %c0_i32 = arith.constant 0 : i32
    %c0_i32_0 = arith.constant 0 : i32
    %c0_i32_1 = arith.constant 0 : i32
    return %0, %c0_i32, %c0_i32_0 : i32, i32, i32
  }
  func.func @transform_7(%arg0: i32, %arg1: i32) -> (i32, i32, i32) {
    %c1_i32 = arith.constant 1 : i32
    %0 = arith.minsi %arg1, %c1_i32 : i32
    %c0_i32 = arith.constant 0 : i32
    %c0_i32_0 = arith.constant 0 : i32
    %c0_i32_1 = arith.constant 0 : i32
    return %0, %c0_i32, %c0_i32_0 : i32, i32, i32
  }
  func.func @transform_8(%arg0: i32, %arg1: i32) -> (i32, i32, i32) {
    %c1_i32 = arith.constant 1 : i32
    %0 = arith.minsi %arg1, %c1_i32 : i32
    %c0_i32 = arith.constant 0 : i32
    %c0_i32_0 = arith.constant 0 : i32
    %c0_i32_1 = arith.constant 0 : i32
    return %0, %c0_i32, %c0_i32_0 : i32, i32, i32
  }
  func.func @transform_9(%arg0: i32, %arg1: i32) -> (i32, i32, i32) {
    %c1_i32 = arith.constant 1 : i32
    %0 = arith.minsi %arg1, %c1_i32 : i32
    %c0_i32 = arith.constant 0 : i32
    %c0_i32_0 = arith.constant 0 : i32
    %c0_i32_1 = arith.constant 0 : i32
    return %0, %c0_i32, %c0_i32_0 : i32, i32, i32
  }
  func.func @transform_10(%arg0: i32, %arg1: i32) -> (i32, i32, i32) {
    %c1_i32 = arith.constant 1 : i32
    %0 = arith.minsi %arg1, %c1_i32 : i32
    %c0_i32 = arith.constant 0 : i32
    %c0_i32_0 = arith.constant 0 : i32
    %c0_i32_1 = arith.constant 0 : i32
    return %0, %c0_i32, %c0_i32_0 : i32, i32, i32
  }
  func.func @transform_11(%arg0: i32, %arg1: i32) -> (i32, i32, i32) {
    %c1_i32 = arith.constant 1 : i32
    %0 = arith.minsi %arg1, %c1_i32 : i32
    %c0_i32 = arith.constant 0 : i32
    %c0_i32_0 = arith.constant 0 : i32
    %c0_i32_1 = arith.constant 0 : i32
    return %0, %c0_i32, %c0_i32_0 : i32, i32, i32
  }
  func.func @transform_12(%arg0: i32, %arg1: i32) -> (i32, i32, i32) {
    %c1_i32 = arith.constant 1 : i32
    %0 = arith.minsi %arg1, %c1_i32 : i32
    %c0_i32 = arith.constant 0 : i32
    %c0_i32_0 = arith.constant 0 : i32
    %c0_i32_1 = arith.constant 0 : i32
    return %0, %c0_i32, %c0_i32_0 : i32, i32, i32
  }
  func.func @transform_13(%arg0: i32, %arg1: i32) -> (i32, i32, i32) {
    %c1_i32 = arith.constant 1 : i32
    %0 = arith.minsi %arg1, %c1_i32 : i32
    %c0_i32 = arith.constant 0 : i32
    %c0_i32_0 = arith.constant 0 : i32
    %c0_i32_1 = arith.constant 0 : i32
    return %0, %c0_i32, %c0_i32_0 : i32, i32, i32
  }
  func.func @transform_14(%arg0: i32, %arg1: i32) -> (i32, i32, i32) {
    %c1_i32 = arith.constant 1 : i32
    %0 = arith.minsi %arg1, %c1_i32 : i32
    %c0_i32 = arith.constant 0 : i32
    %c0_i32_0 = arith.constant 0 : i32
    %c0_i32_1 = arith.constant 0 : i32
    return %0, %c0_i32, %c0_i32_0 : i32, i32, i32
  }
  func.func @transform_15(%arg0: i32, %arg1: i32) -> (i32, i32, i32) {
    %c1_i32 = arith.constant 1 : i32
    %0 = arith.minsi %arg1, %c1_i32 : i32
    %c0_i32 = arith.constant 0 : i32
    %c0_i32_0 = arith.constant 0 : i32
    %c0_i32_1 = arith.constant 0 : i32
    return %0, %c0_i32, %c0_i32_0 : i32, i32, i32
  }
  func.func @transform_16(%arg0: i32, %arg1: i32) -> (i32, i32, i32) {
    %c1_i32 = arith.constant 1 : i32
    %0 = arith.minsi %arg1, %c1_i32 : i32
    %c0_i32 = arith.constant 0 : i32
    %c0_i32_0 = arith.constant 0 : i32
    %c0_i32_1 = arith.constant 0 : i32
    return %0, %c0_i32, %c0_i32_0 : i32, i32, i32
  }
  func.func @transform_17(%arg0: i32, %arg1: i32) -> (i32, i32) {
    %c2_i32 = arith.constant 2 : i32
    %0 = arith.subi %arg1, %c2_i32 : i32
    %c0_i32 = arith.constant 0 : i32
    %1 = arith.maxsi %0, %c0_i32 : i32
    %c0_i32_0 = arith.constant 0 : i32
    return %arg0, %1 : i32, i32
  }
}

</mosaic_0001>

<llo_original>
// kernel: tpu_custom_call.1
$region0: #{tpu_custom_call.1}
  #allocation0 [shape = 'u32[]', space=smem, size = 0x4, offset = 0x4, fixed_abs, tag = 'smem constant byte address 0x4 - core index']
  #allocation1 [shape = 'u32[72,128]{1,0:T(1,128)}', space=vmem, size = 0x9000, scoped, tag = 'internal scratch']
  #allocation2 [shape = 'f32[8,32]{1,0:T(8,128)}', space=vmem, size = 0x1000, scoped, tag = 'scratch operand']
  #allocation3 [shape = 'f32[1,8,8]{2,1,0:T(8,128)}', space=vmem, size = 0x1000, scoped, tag = 'scratch operand']
  %s0 = inlined_call_operand.hbm [shape: f32[16,32], index: 0, kind: input, shape index: {}]
  %s1 = inlined_call_operand.hbm [shape: f32[2,1,8], index: 1, kind: input, shape index: {}]
  %s2 = inlined_call_operand.vmem [shape: f32[1,32], index: 2, kind: input, shape index: {}]
  %s3 = inlined_call_operand.hbm [shape: f32[1,32], index: 3, kind: input, shape index: {}]
  %s4 = inlined_call_operand.hbm [shape: bf16[32,128], index: 4, kind: input, shape index: {}]
  %s5 = inlined_call_operand.vmem [shape: f32[2,1,32], index: 5, kind: input, shape index: {}]
  %s6 = inlined_call_operand.vmem [shape: f32[2,1,32], index: 6, kind: input, shape index: {}]
  %s7 = inlined_call_operand.vmem [shape: bf16[2,32,96], index: 7, kind: input, shape index: {}]
  %s8 = inlined_call_operand.vmem [shape: f32[2,1,96], index: 8, kind: input, shape index: {}]
  %s9 = inlined_call_operand.vmem [shape: bf16[2,32,32], index: 9, kind: input, shape index: {}]
  %s10 = inlined_call_operand.vmem [shape: f32[2,1,32], index: 10, kind: input, shape index: {}]
  %s11 = inlined_call_operand.hbm [shape: f32[2,1,32], index: 11, kind: input, shape index: {}]
  %s12 = inlined_call_operand.vmem [shape: f32[2,1,32], index: 12, kind: input, shape index: {}]
  %s13 = inlined_call_operand.vmem [shape: bf16[2,32,64], index: 13, kind: input, shape index: {}]
  %s14 = inlined_call_operand.vmem [shape: f32[2,1,64], index: 14, kind: input, shape index: {}]
  %s15 = inlined_call_operand.vmem [shape: bf16[2,64,32], index: 15, kind: input, shape index: {}]
  %s16 = inlined_call_operand.vmem [shape: f32[2,1,32], index: 16, kind: input, shape index: {}]
  %s17 = inlined_call_operand.hbm [shape: f32[16,128], index: 17, kind: output, shape index: {}]
  %s18 = sld [smem:[#allocation0]]
  $region137: #{tpu_custom_call.1} parent=0
    _
  %s20 = ssub.s32 1, %s18
  %s21 = scalar_select 0, %s20, %s18
  $region1: #{tpu_custom_call.1} parent=0
    #allocation4 [shape = 'u8[8192]{0}', space=vmem, size = 0x2000, scoped, tag = 'input window, operand 0']
    #allocation5 [shape = 's32[2]{0}', space=sflag, size = 0x8, scoped, tag = 'scoped memory for tpu_custom_call.1']
    #allocation6 [shape = 's32[2]{0}', space=sflag, size = 0x8, scoped, tag = 'scoped memory for tpu_custom_call.1']
    #allocation7 [shape = 'u8[1024]{0}', space=vmem, size = 0x400, scoped, tag = 'input window, operand 1']
    #allocation8 [shape = 's32[2]{0}', space=sflag, size = 0x8, scoped, tag = 'scoped memory for tpu_custom_call.1']
    #allocation9 [shape = 'u8[512]{0}', space=vmem, size = 0x400, scoped, tag = 'input window, operand 3, single buffered']
    #allocation10 [shape = 'u8[16384]{0}', space=vmem, size = 0x4000, scoped, tag = 'input window, operand 4']
    #allocation11 [shape = 's32[2]{0}', space=sflag, size = 0x8, scoped, tag = 'scoped memory for tpu_custom_call.1']
    #allocation12 [shape = 'u8[1024]{0}', space=vmem, size = 0x400, scoped, tag = 'input window, operand 11']
    #allocation13 [shape = 'u8[8192]{0}', space=vmem, size = 0x2000, scoped, tag = 'output window, operand 0']
    %22 = vsyncpa [#allocation5], 0
    %s23 = scalar_lea.sflag [#allocation5], 1
    %24 = vsyncpa %s23, 0
    %25 = vsyncpa [#allocation8], 0
    %s26 = scalar_lea.sflag [#allocation8], 1
    %27 = vsyncpa %s26, 0
    %28 = vsyncpa [#allocation11], 0
    %s29 = scalar_lea.sflag [#allocation11], 1
    %30 = vsyncpa %s29, 0
    %31 = vsyncpa [#allocation6], 0
    %s32 = scalar_lea.sflag [#allocation6], 1
    %33 = vsyncpa %s32, 0
    loop: start=0, step=1, limit=8
    $region2: #{tpu_custom_call.1} parent=1 // loop_pre_header
      _
    $region3: #{tpu_custom_call.1} parent=1 // loop_header
      %s35 = sphi 0, %s39
      %p36 = scmp.ge.s32.totalorder %s35, 8
      %s42 = sphi 0, %s54
      %s43 = sphi 0, %s50
      %s44 = sphi 0, %s42
      %s45 = sphi 0, %s43
      %s46 = sphi 0, %s44
      %s47 = sphi 0, %s45
      %s57 = sphi 0, %s59
      %s60 = sphi 0, %s57
      %s61 = sphi 0, %s60
      %s77 = sphi 0, %s61
      %s83 = sphi 0, %s85
      %s86 = sphi 0, %s83
      %s87 = sphi 0, %s86
      %s103 = sphi 0, %s87
      %s107 = sphi 0, %s107
      %s109 = sphi 0, %s107
      %s110 = sphi 0, %s109
      %s124 = sphi 0, %s110
      %s128 = sphi 0, %s128
      %s130 = sphi 0, %s128
      %s131 = sphi 0, %s130
      %s145 = sphi 0, %s131
      %s157 = sphi 0, %s159
      %s160 = sphi 0, %s157
      %s161 = sphi 0, %s160
      %s177 = sphi 0, %s161
      %s187 = sphi 0, %s189
      %s190 = sphi 0, %s187
      %s191 = sphi 0, %s190
      %s207 = sphi 0, %s191
      %s217 = sphi 0, %s219
      %s220 = sphi 0, %s217
      %s221 = sphi 0, %s220
      %s237 = sphi 0, %s221
      %s247 = sphi 0, %s249
      %s250 = sphi 0, %s247
      %s251 = sphi 0, %s250
      %s267 = sphi 0, %s251
      %s277 = sphi 0, %s279
      %s280 = sphi 0, %s277
      %s281 = sphi 0, %s280
      %s297 = sphi 0, %s281
      %s307 = sphi 0, %s309
      %s310 = sphi 0, %s307
      %s311 = sphi 0, %s310
      %s327 = sphi 0, %s311
      %s337 = sphi 0, %s339
      %s340 = sphi 0, %s337
      %s341 = sphi 0, %s340
      %s357 = sphi 0, %s341
      %s367 = sphi 0, %s369
      %s370 = sphi 0, %s367
      %s371 = sphi 0, %s370
      %s387 = sphi 0, %s371
      %s397 = sphi 0, %s399
      %s400 = sphi 0, %s397
      %s401 = sphi 0, %s400
      %s417 = sphi 0, %s401
      %s427 = sphi 0, %s429
      %s430 = sphi 0, %s427
      %s431 = sphi 0, %s430
      %s447 = sphi 0, %s431
      %s457 = sphi 0, %s459
      %s460 = sphi 0, %s457
      %s461 = sphi 0, %s460
      %s477 = sphi 0, %s461
      %s487 = sphi 0, %s489
      %s490 = sphi 0, %s487
      %s491 = sphi 0, %s490
      %s507 = sphi 0, %s491
      %s517 = sphi 0, %s519
      %s520 = sphi 0, %s517
      %s521 = sphi 0, %s520
      %s537 = sphi 0, %s521
      %s551 = sphi 0, %s553
      %s554 = sphi 0, %s551
      %s555 = sphi 0, %s554
      %s571 = sphi 0, %s555
    $region4: #{tpu_custom_call.1} parent=1 // loop_header_branch
      %38 = sbr.rel (%p36) target = $region8
    $region5: #{tpu_custom_call.1} parent=1 // loop_body
      %s40 = ssub.s32 %s35, 1
      %s41 = ssub.s32 %s35, 2
      %s48 = sadd.s32 1, %s43
      %p49 = scmp.ge.s32.totalorder %s48, 3
      %s50 = scalar_select %p49, 0, %s48
      %s51 = sadd.s32 1, %s42
      %s52 = scalar_select %p49, %s51, %s42
      %p53 = scmp.ge.s32.totalorder %s52, 2
      %s54 = scalar_select %p53, 0, %s52
      %s55 = ssub.s32 %s42, %s54
      %p56 = scmp.eq.s32.totalorder %s55, 0
      %s58 = sadd.s32 %s57, 1
      %s59 = scalar_select %p56, %s57, %s58
      %p62 = pneg %p56
      %p63 = scmp.eq.s32.totalorder %s35, 5
      %p64 = por %p62, %p63
      %p65 = scmp.ne.s32.totalorder %s57, %s60
      %p66 = scmp.eq.s32.totalorder %s35, 0
      %p67 = por %p65, %p66
      %p68 = scmp.ne.s32.totalorder %s57, %s60
      %p69 = scmp.eq.s32.totalorder %s40, 5
      %p70 = por %p68, %p69
      %p71 = scmp.ne.s32.totalorder %s60, %s61
      %p72 = scmp.eq.s32.totalorder %s40, 0
      %p73 = por %p71, %p72
      %p74 = scmp.ne.s32.totalorder %s60, %s61
      %p75 = scmp.eq.s32.totalorder %s41, 5
      %p76 = por %p74, %p75
      %p78 = scmp.ne.s32.totalorder %s61, %s77
      %p79 = scmp.eq.s32.totalorder %s41, 0
      %p80 = por %p78, %p79
      %s81 = ssub.s32 %s42, %s54
      %p82 = scmp.eq.s32.totalorder %s81, 0
      %s84 = sadd.s32 %s83, 1
      %s85 = scalar_select %p82, %s83, %s84
      %p88 = pneg %p82
      %p89 = scmp.eq.s32.totalorder %s35, 5
      %p90 = por %p88, %p89
      %p91 = scmp.ne.s32.totalorder %s83, %s86
      %p92 = scmp.eq.s32.totalorder %s35, 0
      %p93 = por %p91, %p92
      %p94 = scmp.ne.s32.totalorder %s83, %s86
      %p95 = scmp.eq.s32.totalorder %s40, 5
      %p96 = por %p94, %p95
      %p97 = scmp.ne.s32.totalorder %s86, %s87
      %p98 = scmp.eq.s32.totalorder %s40, 0
      %p99 = por %p97, %p98
      %p100 = scmp.ne.s32.totalorder %s86, %s87
      %p101 = scmp.eq.s32.totalorder %s41, 5
      %p102 = por %p100, %p101
      %p104 = scmp.ne.s32.totalorder %s87, %s103
      %p105 = scmp.eq.s32.totalorder %s41, 0
      %p106 = por %p104, %p105
      %s108 = sadd.s32 %s107, 1
      %p111 = scmp.eq.s32.totalorder %s35, 5
      %p112 = scmp.ne.s32.totalorder %s107, %s109
      %p113 = scmp.eq.s32.totalorder %s35, 0
      %p114 = por %p112, %p113
      %p115 = scmp.ne.s32.totalorder %s107, %s109
      %p116 = scmp.eq.s32.totalorder %s40, 5
      %p117 = por %p115, %p116
      %p118 = scmp.ne.s32.totalorder %s109, %s110
      %p119 = scmp.eq.s32.totalorder %s40, 0
      %p120 = por %p118, %p119
      %p121 = scmp.ne.s32.totalorder %s109, %s110
      %p122 = scmp.eq.s32.totalorder %s41, 5
      %p123 = por %p121, %p122
      %p125 = scmp.ne.s32.totalorder %s110, %s124
      %p126 = scmp.eq.s32.totalorder %s41, 0
      %p127 = por %p125, %p126
      %s129 = sadd.s32 %s128, 1
      %p132 = scmp.eq.s32.totalorder %s35, 5
      %p133 = scmp.ne.s32.totalorder %s128, %s130
      %p134 = scmp.eq.s32.totalorder %s35, 0
      %p135 = por %p133, %p134
      %p136 = scmp.ne.s32.totalorder %s128, %s130
      %p137 = scmp.eq.s32.totalorder %s40, 5
      %p138 = por %p136, %p137
      %p139 = scmp.ne.s32.totalorder %s130, %s131
      %p140 = scmp.eq.s32.totalorder %s40, 0
      %p141 = por %p139, %p140
      %p142 = scmp.ne.s32.totalorder %s130, %s131
      %p143 = scmp.eq.s32.totalorder %s41, 5
      %p144 = por %p142, %p143
      %p146 = scmp.ne.s32.totalorder %s131, %s145
      %p147 = scmp.eq.s32.totalorder %s41, 0
      %p148 = por %p146, %p147
      %s149 = ssub.s32 %s43, 2
      %p150 = scmp.gt.s32.totalorder %s149, 0
      %s151 = scalar_select %p150, %s149, 0
      %s152 = ssub.s32 %s50, 2
      %p153 = scmp.gt.s32.totalorder %s152, 0
      %s154 = scalar_select %p153, %s152, 0
      %s155 = ssub.s32 %s151, %s154
      %p156 = scmp.eq.s32.totalorder %s155, 0
      %s158 = sadd.s32 %s157, 1
      %s159 = scalar_select %p156, %s157, %s158
      %p162 = pneg %p156
      %p163 = scmp.eq.s32.totalorder %s35, 5
      %p164 = por %p162, %p163
      %p165 = scmp.ne.s32.totalorder %s157, %s160
      %p166 = scmp.eq.s32.totalorder %s35, 0
      %p167 = por %p165, %p166
      %p168 = scmp.ne.s32.totalorder %s157, %s160
      %p169 = scmp.eq.s32.totalorder %s40, 5
      %p170 = por %p168, %p169
      %p171 = scmp.ne.s32.totalorder %s160, %s161
      %p172 = scmp.eq.s32.totalorder %s40, 0
      %p173 = por %p171, %p172
      %p174 = scmp.ne.s32.totalorder %s160, %s161
      %p175 = scmp.eq.s32.totalorder %s41, 5
      %p176 = por %p174, %p175
      %p178 = scmp.ne.s32.totalorder %s161, %s177
      %p179 = scmp.eq.s32.totalorder %s41, 0
      %p180 = por %p178, %p179
      %p181 = scmp.lt.s32.totalorder %s43, 1
      %s182 = scalar_select %p181, %s43, 1
      %p183 = scmp.lt.s32.totalorder %s50, 1
      %s184 = scalar_select %p183, %s50, 1
      %s185 = ssub.s32 %s182, %s184
      %p186 = scmp.eq.s32.totalorder %s185, 0
      %s188 = sadd.s32 %s187, 1
      %s189 = scalar_select %p186, %s187, %s188
      %p192 = pneg %p186
      %p193 = scmp.eq.s32.totalorder %s35, 5
      %p194 = por %p192, %p193
      %p195 = scmp.ne.s32.totalorder %s187, %s190
      %p196 = scmp.eq.s32.totalorder %s35, 0
      %p197 = por %p195, %p196
      %p198 = scmp.ne.s32.totalorder %s187, %s190
      %p199 = scmp.eq.s32.totalorder %s40, 5
      %p200 = por %p198, %p199
      %p201 = scmp.ne.s32.totalorder %s190, %s191
      %p202 = scmp.eq.s32.totalorder %s40, 0
      %p203 = por %p201, %p202
      %p204 = scmp.ne.s32.totalorder %s190, %s191
      %p205 = scmp.eq.s32.totalorder %s41, 5
      %p206 = por %p204, %p205
      %p208 = scmp.ne.s32.totalorder %s191, %s207
      %p209 = scmp.eq.s32.totalorder %s41, 0
      %p210 = por %p208, %p209
      %p211 = scmp.lt.s32.totalorder %s43, 1
      %s212 = scalar_select %p211, %s43, 1
      %p213 = scmp.lt.s32.totalorder %s50, 1
      %s214 = scalar_select %p213, %s50, 1
      %s215 = ssub.s32 %s212, %s214
      %p216 = scmp.eq.s32.totalorder %s215, 0
      %s218 = sadd.s32 %s217, 1
      %s219 = scalar_select %p216, %s217, %s218
      %p222 = pneg %p216
      %p223 = scmp.eq.s32.totalorder %s35, 5
      %p224 = por %p222, %p223
      %p225 = scmp.ne.s32.totalorder %s217, %s220
      %p226 = scmp.eq.s32.totalorder %s35, 0
      %p227 = por %p225, %p226
      %p228 = scmp.ne.s32.totalorder %s217, %s220
      %p229 = scmp.eq.s32.totalorder %s40, 5
      %p230 = por %p228, %p229
      %p231 = scmp.ne.s32.totalorder %s220, %s221
      %p232 = scmp.eq.s32.totalorder %s40, 0
      %p233 = por %p231, %p232
      %p234 = scmp.ne.s32.totalorder %s220, %s221
      %p235 = scmp.eq.s32.totalorder %s41, 5
      %p236 = por %p234, %p235
      %p238 = scmp.ne.s32.totalorder %s221, %s237
      %p239 = scmp.eq.s32.totalorder %s41, 0
      %p240 = por %p238, %p239
      %p241 = scmp.lt.s32.totalorder %s43, 1
      %s242 = scalar_select %p241, %s43, 1
      %p243 = scmp.lt.s32.totalorder %s50, 1
      %s244 = scalar_select %p243, %s50, 1
      %s245 = ssub.s32 %s242, %s244
      %p246 = scmp.eq.s32.totalorder %s245, 0
      %s248 = sadd.s32 %s247, 1
      %s249 = scalar_select %p246, %s247, %s248
      %p252 = pneg %p246
      %p253 = scmp.eq.s32.totalorder %s35, 5
      %p254 = por %p252, %p253
      %p255 = scmp.ne.s32.totalorder %s247, %s250
      %p256 = scmp.eq.s32.totalorder %s35, 0
      %p257 = por %p255, %p256
      %p258 = scmp.ne.s32.totalorder %s247, %s250
      %p259 = scmp.eq.s32.totalorder %s40, 5
      %p260 = por %p258, %p259
      %p261 = scmp.ne.s32.totalorder %s250, %s251
      %p262 = scmp.eq.s32.totalorder %s40, 0
      %p263 = por %p261, %p262
      %p264 = scmp.ne.s32.totalorder %s250, %s251
      %p265 = scmp.eq.s32.totalorder %s41, 5
      %p266 = por %p264, %p265
      %p268 = scmp.ne.s32.totalorder %s251, %s267
      %p269 = scmp.eq.s32.totalorder %s41, 0
      %p270 = por %p268, %p269
      %p271 = scmp.lt.s32.totalorder %s43, 1
      %s272 = scalar_select %p271, %s43, 1
      %p273 = scmp.lt.s32.totalorder %s50, 1
      %s274 = scalar_select %p273, %s50, 1
      %s275 = ssub.s32 %s272, %s274
      %p276 = scmp.eq.s32.totalorder %s275, 0
      %s278 = sadd.s32 %s277, 1
      %s279 = scalar_select %p276, %s277, %s278
      %p282 = pneg %p276
      %p283 = scmp.eq.s32.totalorder %s35, 5
      %p284 = por %p282, %p283
      %p285 = scmp.ne.s32.totalorder %s277, %s280
      %p286 = scmp.eq.s32.totalorder %s35, 0
      %p287 = por %p285, %p286
      %p288 = scmp.ne.s32.totalorder %s277, %s280
      %p289 = scmp.eq.s32.totalorder %s40, 5
      %p290 = por %p288, %p289
      %p291 = scmp.ne.s32.totalorder %s280, %s281
      %p292 = scmp.eq.s32.totalorder %s40, 0
      %p293 = por %p291, %p292
      %p294 = scmp.ne.s32.totalorder %s280, %s281
      %p295 = scmp.eq.s32.totalorder %s41, 5
      %p296 = por %p294, %p295
      %p298 = scmp.ne.s32.totalorder %s281, %s297
      %p299 = scmp.eq.s32.totalorder %s41, 0
      %p300 = por %p298, %p299
      %p301 = scmp.lt.s32.totalorder %s43, 1
      %s302 = scalar_select %p301, %s43, 1
      %p303 = scmp.lt.s32.totalorder %s50, 1
      %s304 = scalar_select %p303, %s50, 1
      %s305 = ssub.s32 %s302, %s304
      %p306 = scmp.eq.s32.totalorder %s305, 0
      %s308 = sadd.s32 %s307, 1
      %s309 = scalar_select %p306, %s307, %s308
      %p312 = pneg %p306
      %p313 = scmp.eq.s32.totalorder %s35, 5
      %p314 = por %p312, %p313
      %p315 = scmp.ne.s32.totalorder %s307, %s310
      %p316 = scmp.eq.s32.totalorder %s35, 0
      %p317 = por %p315, %p316
      %p318 = scmp.ne.s32.totalorder %s307, %s310
      %p319 = scmp.eq.s32.totalorder %s40, 5
      %p320 = por %p318, %p319
      %p321 = scmp.ne.s32.totalorder %s310, %s311
      %p322 = scmp.eq.s32.totalorder %s40, 0
      %p323 = por %p321, %p322
      %p324 = scmp.ne.s32.totalorder %s310, %s311
      %p325 = scmp.eq.s32.totalorder %s41, 5
      %p326 = por %p324, %p325
      %p328 = scmp.ne.s32.totalorder %s311, %s327
      %p329 = scmp.eq.s32.totalorder %s41, 0
      %p330 = por %p328, %p329
      %p331 = scmp.lt.s32.totalorder %s43, 1
      %s332 = scalar_select %p331, %s43, 1
      %p333 = scmp.lt.s32.totalorder %s50, 1
      %s334 = scalar_select %p333, %s50, 1
      %s335 = ssub.s32 %s332, %s334
      %p336 = scmp.eq.s32.totalorder %s335, 0
      %s338 = sadd.s32 %s337, 1
      %s339 = scalar_select %p336, %s337, %s338
      %p342 = pneg %p336
      %p343 = scmp.eq.s32.totalorder %s35, 5
      %p344 = por %p342, %p343
      %p345 = scmp.ne.s32.totalorder %s337, %s340
      %p346 = scmp.eq.s32.totalorder %s35, 0
      %p347 = por %p345, %p346
      %p348 = scmp.ne.s32.totalorder %s337, %s340
      %p349 = scmp.eq.s32.totalorder %s40, 5
      %p350 = por %p348, %p349
      %p351 = scmp.ne.s32.totalorder %s340, %s341
      %p352 = scmp.eq.s32.totalorder %s40, 0
      %p353 = por %p351, %p352
      %p354 = scmp.ne.s32.totalorder %s340, %s341
      %p355 = scmp.eq.s32.totalorder %s41, 5
      %p356 = por %p354, %p355
      %p358 = scmp.ne.s32.totalorder %s341, %s357
      %p359 = scmp.eq.s32.totalorder %s41, 0
      %p360 = por %p358, %p359
      %p361 = scmp.lt.s32.totalorder %s43, 1
      %s362 = scalar_select %p361, %s43, 1
      %p363 = scmp.lt.s32.totalorder %s50, 1
      %s364 = scalar_select %p363, %s50, 1
      %s365 = ssub.s32 %s362, %s364
      %p366 = scmp.eq.s32.totalorder %s365, 0
      %s368 = sadd.s32 %s367, 1
      %s369 = scalar_select %p366, %s367, %s368
      %p372 = pneg %p366
      %p373 = scmp.eq.s32.totalorder %s35, 5
      %p374 = por %p372, %p373
      %p375 = scmp.ne.s32.totalorder %s367, %s370
      %p376 = scmp.eq.s32.totalorder %s35, 0
      %p377 = por %p375, %p376
      %p378 = scmp.ne.s32.totalorder %s367, %s370
      %p379 = scmp.eq.s32.totalorder %s40, 5
      %p380 = por %p378, %p379
      %p381 = scmp.ne.s32.totalorder %s370, %s371
      %p382 = scmp.eq.s32.totalorder %s40, 0
      %p383 = por %p381, %p382
      %p384 = scmp.ne.s32.totalorder %s370, %s371
      %p385 = scmp.eq.s32.totalorder %s41, 5
      %p386 = por %p384, %p385
      %p388 = scmp.ne.s32.totalorder %s371, %s387
      %p389 = scmp.eq.s32.totalorder %s41, 0
      %p390 = por %p388, %p389
      %p391 = scmp.lt.s32.totalorder %s43, 1
      %s392 = scalar_select %p391, %s43, 1
      %p393 = scmp.lt.s32.totalorder %s50, 1
      %s394 = scalar_select %p393, %s50, 1
      %s395 = ssub.s32 %s392, %s394
      %p396 = scmp.eq.s32.totalorder %s395, 0
      %s398 = sadd.s32 %s397, 1
      %s399 = scalar_select %p396, %s397, %s398
      %p402 = pneg %p396
      %p403 = scmp.eq.s32.totalorder %s35, 5
      %p404 = por %p402, %p403
      %p405 = scmp.ne.s32.totalorder %s397, %s400
      %p406 = scmp.eq.s32.totalorder %s35, 0
      %p407 = por %p405, %p406
      %p408 = scmp.ne.s32.totalorder %s397, %s400
      %p409 = scmp.eq.s32.totalorder %s40, 5
      %p410 = por %p408, %p409
      %p411 = scmp.ne.s32.totalorder %s400, %s401
      %p412 = scmp.eq.s32.totalorder %s40, 0
      %p413 = por %p411, %p412
      %p414 = scmp.ne.s32.totalorder %s400, %s401
      %p415 = scmp.eq.s32.totalorder %s41, 5
      %p416 = por %p414, %p415
      %p418 = scmp.ne.s32.totalorder %s401, %s417
      %p419 = scmp.eq.s32.totalorder %s41, 0
      %p420 = por %p418, %p419
      %p421 = scmp.lt.s32.totalorder %s43, 1
      %s422 = scalar_select %p421, %s43, 1
      %p423 = scmp.lt.s32.totalorder %s50, 1
      %s424 = scalar_select %p423, %s50, 1
      %s425 = ssub.s32 %s422, %s424
      %p426 = scmp.eq.s32.totalorder %s425, 0
      %s428 = sadd.s32 %s427, 1
      %s429 = scalar_select %p426, %s427, %s428
      %p432 = pneg %p426
      %p433 = scmp.eq.s32.totalorder %s35, 5
      %p434 = por %p432, %p433
      %p435 = scmp.ne.s32.totalorder %s427, %s430
      %p436 = scmp.eq.s32.totalorder %s35, 0
      %p437 = por %p435, %p436
      %p438 = scmp.ne.s32.totalorder %s427, %s430
      %p439 = scmp.eq.s32.totalorder %s40, 5
      %p440 = por %p438, %p439
      %p441 = scmp.ne.s32.totalorder %s430, %s431
      %p442 = scmp.eq.s32.totalorder %s40, 0
      %p443 = por %p441, %p442
      %p444 = scmp.ne.s32.totalorder %s430, %s431
      %p445 = scmp.eq.s32.totalorder %s41, 5
      %p446 = por %p444, %p445
      %p448 = scmp.ne.s32.totalorder %s431, %s447
      %p449 = scmp.eq.s32.totalorder %s41, 0
      %p450 = por %p448, %p449
      %p451 = scmp.lt.s32.totalorder %s43, 1
      %s452 = scalar_select %p451, %s43, 1
      %p453 = scmp.lt.s32.totalorder %s50, 1
      %s454 = scalar_select %p453, %s50, 1
      %s455 = ssub.s32 %s452, %s454
      %p456 = scmp.eq.s32.totalorder %s455, 0
      %s458 = sadd.s32 %s457, 1
      %s459 = scalar_select %p456, %s457, %s458
      %p462 = pneg %p456
      %p463 = scmp.eq.s32.totalorder %s35, 5
      %p464 = por %p462, %p463
      %p465 = scmp.ne.s32.totalorder %s457, %s460
      %p466 = scmp.eq.s32.totalorder %s35, 0
      %p467 = por %p465, %p466
      %p468 = scmp.ne.s32.totalorder %s457, %s460
      %p469 = scmp.eq.s32.totalorder %s40, 5
      %p470 = por %p468, %p469
      %p471 = scmp.ne.s32.totalorder %s460, %s461
      %p472 = scmp.eq.s32.totalorder %s40, 0
      %p473 = por %p471, %p472
      %p474 = scmp.ne.s32.totalorder %s460, %s461
      %p475 = scmp.eq.s32.totalorder %s41, 5
      %p476 = por %p474, %p475
      %p478 = scmp.ne.s32.totalorder %s461, %s477
      %p479 = scmp.eq.s32.totalorder %s41, 0
      %p480 = por %p478, %p479
      %p481 = scmp.lt.s32.totalorder %s43, 1
      %s482 = scalar_select %p481, %s43, 1
      %p483 = scmp.lt.s32.totalorder %s50, 1
      %s484 = scalar_select %p483, %s50, 1
      %s485 = ssub.s32 %s482, %s484
      %p486 = scmp.eq.s32.totalorder %s485, 0
      %s488 = sadd.s32 %s487, 1
      %s489 = scalar_select %p486, %s487, %s488
      %p492 = pneg %p486
      %p493 = scmp.eq.s32.totalorder %s35, 5
      %p494 = por %p492, %p493
      %p495 = scmp.ne.s32.totalorder %s487, %s490
      %p496 = scmp.eq.s32.totalorder %s35, 0
      %p497 = por %p495, %p496
      %p498 = scmp.ne.s32.totalorder %s487, %s490
      %p499 = scmp.eq.s32.totalorder %s40, 5
      %p500 = por %p498, %p499
      %p501 = scmp.ne.s32.totalorder %s490, %s491
      %p502 = scmp.eq.s32.totalorder %s40, 0
      %p503 = por %p501, %p502
      %p504 = scmp.ne.s32.totalorder %s490, %s491
      %p505 = scmp.eq.s32.totalorder %s41, 5
      %p506 = por %p504, %p505
      %p508 = scmp.ne.s32.totalorder %s491, %s507
      %p509 = scmp.eq.s32.totalorder %s41, 0
      %p510 = por %p508, %p509
      %p511 = scmp.lt.s32.totalorder %s43, 1
      %s512 = scalar_select %p511, %s43, 1
      %p513 = scmp.lt.s32.totalorder %s50, 1
      %s514 = scalar_select %p513, %s50, 1
      %s515 = ssub.s32 %s512, %s514
      %p516 = scmp.eq.s32.totalorder %s515, 0
      %s518 = sadd.s32 %s517, 1
      %s519 = scalar_select %p516, %s517, %s518
      %p522 = pneg %p516
      %p523 = scmp.eq.s32.totalorder %s35, 5
      %p524 = por %p522, %p523
      %p525 = scmp.ne.s32.totalorder %s517, %s520
      %p526 = scmp.eq.s32.totalorder %s35, 0
      %p527 = por %p525, %p526
      %p528 = scmp.ne.s32.totalorder %s517, %s520
      %p529 = scmp.eq.s32.totalorder %s40, 5
      %p530 = por %p528, %p529
      %p531 = scmp.ne.s32.totalorder %s520, %s521
      %p532 = scmp.eq.s32.totalorder %s40, 0
      %p533 = por %p531, %p532
      %p534 = scmp.ne.s32.totalorder %s520, %s521
      %p535 = scmp.eq.s32.totalorder %s41, 5
      %p536 = por %p534, %p535
      %p538 = scmp.ne.s32.totalorder %s521, %s537
      %p539 = scmp.eq.s32.totalorder %s41, 0
      %p540 = por %p538, %p539
      %s541 = ssub.s32 %s43, 2
      %p542 = scmp.gt.s32.totalorder %s541, 0
      %s543 = scalar_select %p542, %s541, 0
      %s544 = ssub.s32 %s50, 2
      %p545 = scmp.gt.s32.totalorder %s544, 0
      %s546 = scalar_select %p545, %s544, 0
      %s547 = ssub.s32 %s42, %s54
      %s548 = ssub.s32 %s543, %s546
      %s549 = sor.u32 %s547, %s548
      %p550 = scmp.eq.s32.totalorder %s549, 0
      %s552 = sadd.s32 %s551, 1
      %s553 = scalar_select %p550, %s551, %s552
      %p556 = pneg %p550
      %p557 = scmp.eq.s32.totalorder %s35, 5
      %p558 = por %p556, %p557
      %p559 = scmp.ne.s32.totalorder %s551, %s554
      %p560 = scmp.eq.s32.totalorder %s35, 0
      %p561 = por %p559, %p560
      %p562 = scmp.ne.s32.totalorder %s551, %s554
      %p563 = scmp.eq.s32.totalorder %s40, 5
      %p564 = por %p562, %p563
      %p565 = scmp.ne.s32.totalorder %s554, %s555
      %p566 = scmp.eq.s32.totalorder %s40, 0
      %p567 = por %p565, %p566
      %p568 = scmp.ne.s32.totalorder %s554, %s555
      %p569 = scmp.eq.s32.totalorder %s41, 5
      %p570 = por %p568, %p569
      %p572 = scmp.ne.s32.totalorder %s555, %s571
      %p573 = scmp.eq.s32.totalorder %s41, 0
      %p574 = por %p572, %p573
      %p575 = scmp.le.s32.totalorder 1, %s35
      %p576 = scmp.lt.s32.totalorder %s35, 7
      %p577 = pnand %p575, %p576
      %p578 = pneg %p577
      // Predicated region
      $region9: #{tpu_custom_call.1} parent=5 // pred_check
        _
      $region10: #{tpu_custom_call.1} parent=5 // pred_check_branch
        %580 = sbr.rel (%p577) target = $region12
      $region11: #{tpu_custom_call.1} parent=5 // pred_region
        %s581 = ssub.s32 %s35, 1
        // Predicated region
        $region13: #{tpu_custom_call.1} parent=11 // pred_check
          %p582 = pneg %p120
        $region14: #{tpu_custom_call.1} parent=11 // pred_check_branch
          %584 = sbr.rel (%p582) target = $region16
        $region15: #{tpu_custom_call.1} parent=11 // pred_region
          _
        $region16: #{tpu_custom_call.1} parent=11 // pred_fallthru
          _
        // Predicated region
        $region17: #{tpu_custom_call.1} parent=11 // pred_check
          %p585 = pneg %p141
        $region18: #{tpu_custom_call.1} parent=11 // pred_check_branch
          %587 = sbr.rel (%p585) target = $region20
        $region19: #{tpu_custom_call.1} parent=11 // pred_region
          %589 = vsyncadd [#allocation8], 0
          %s591 = sshll.u32 %s3, 4
          %s592 = int_to_ptr.hbm [resolvable:$true] %s591
          %s593 = sshll.u32 [#allocation9], 4
          %s594 = int_to_ptr.vmem [resolvable:$true] %s593
          %596 = dma.hbm_to_vmem [thread:$0]  %s592, 16, %s594, [#allocation8]
        $region20: #{tpu_custom_call.1} parent=11 // pred_fallthru
          _
      $region12: #{tpu_custom_call.1} parent=5 // pred_fallthru
        _
      %p597 = scmp.lt.s32.totalorder %s35, 6
      // Predicated region
      $region21: #{tpu_custom_call.1} parent=5 // pred_check
        %p598 = pneg %p597
      $region22: #{tpu_custom_call.1} parent=5 // pred_check_branch
        %600 = sbr.rel (%p598) target = $region24
      $region23: #{tpu_custom_call.1} parent=5 // pred_region
        // Predicated region
        $region25: #{tpu_custom_call.1} parent=23 // pred_check
          %p601 = pneg %p67
        $region26: #{tpu_custom_call.1} parent=23 // pred_check_branch
          %603 = sbr.rel (%p601) target = $region28
        $region27: #{tpu_custom_call.1} parent=23 // pred_region
          %s604 = sand.u32 %s57, 1
          %s605 = scalar_lea.sflag [#allocation5], %s604
          %s606 = sand.u32 %s57, 1
          %s607 = smul.addr %s606, 8
          %s608 = scalar_lea.vmem [#allocation4], %s607
          %610 = vsyncadd %s605, 0
          %s611 = smul.addr %s42, 8
          %s612 = scalar_lea.hbm %s0, %s611
          %s614 = sshll.u32 %s612, 4
          %s615 = int_to_ptr.hbm [resolvable:$true] %s614
          %s616 = sshll.u32 %s608, 4
          %s617 = int_to_ptr.vmem [resolvable:$true] %s616
          %619 = dma.hbm_to_vmem [thread:$0]  %s615, 128, %s617, %s605
        $region28: #{tpu_custom_call.1} parent=23 // pred_fallthru
          _
        // Predicated region
        $region29: #{tpu_custom_call.1} parent=23 // pred_check
          %p620 = pneg %p93
        $region30: #{tpu_custom_call.1} parent=23 // pred_check_branch
          %622 = sbr.rel (%p620) target = $region32
        $region31: #{tpu_custom_call.1} parent=23 // pred_region
          %s623 = sand.u32 %s35, 1
          %s624 = scalar_lea.sflag [#allocation8], %s623
          %s625 = sand.u32 %s83, 1
          %s626 = scalar_lea.vmem [#allocation7], %s625
          %628 = vsyncadd %s624, 0
          %s629 = scalar_lea.hbm %s1, %s42
          %s631 = sshll.u32 %s629, 4
          %s632 = int_to_ptr.hbm [resolvable:$true] %s631
          %s633 = sshll.u32 %s626, 4
          %s634 = int_to_ptr.vmem [resolvable:$true] %s633
          %636 = dma.hbm_to_vmem [thread:$0]  %s632, 16, %s634, %s624
        $region32: #{tpu_custom_call.1} parent=23 // pred_fallthru
          _
        // Predicated region
        $region33: #{tpu_custom_call.1} parent=23 // pred_check
          %p637 = pneg %p167
        $region34: #{tpu_custom_call.1} parent=23 // pred_check_branch
          %639 = sbr.rel (%p637) target = $region36
        $region35: #{tpu_custom_call.1} parent=23 // pred_region
          %s640 = sand.u32 %s35, 1
          %s641 = scalar_lea.sflag [#allocation11], %s640
          %s642 = sand.u32 %s157, 1
          %s643 = smul.addr %s642, 16
          %s644 = scalar_lea.vmem [#allocation10], %s643
          %s645 = ssub.s32 %s43, 2
          %p646 = scmp.gt.s32.totalorder %s645, 0
          %s647 = scalar_select %p646, %s645, 0
          %649 = vsyncadd %s641, 0
          %s650 = smul.addr %s647, 4
          %s651 = scalar_lea.hbm %s4, %s650
          %s652 = sshll.u32 %s651, 4
          %s653 = int_to_ptr.hbm [resolvable:$true] %s652
          %s654 = sshll.u32 %s644, 4
          %s655 = int_to_ptr.vmem [resolvable:$true] %s654
          %660 = dma.hbm_to_vmem [thread:$0]  %s653, 256, %s655, %s641, 64, 64, 4
        $region36: #{tpu_custom_call.1} parent=23 // pred_fallthru
          _
        // Predicated region
        $region37: #{tpu_custom_call.1} parent=23 // pred_check
          %p661 = pneg %p197
        $region38: #{tpu_custom_call.1} parent=23 // pred_check_branch
          %663 = sbr.rel (%p661) target = $region40
        $region39: #{tpu_custom_call.1} parent=23 // pred_region
          %p664 = scmp.lt.s32.totalorder %s43, 1
          %s665 = scalar_select %p664, %s43, 1
          %p666 = scmp.lt.s32.totalorder %s665, 1
          %s667 = scalar_select %p666, %s665, 1
          %s668 = scalar_lea.vmem %s5, %s667
          %p669 = scmp.lt.s32.totalorder %s43, 1
          %s670 = scalar_select %p669, %s43, 1
        $region40: #{tpu_custom_call.1} parent=23 // pred_fallthru
          _
        // Predicated region
        $region41: #{tpu_custom_call.1} parent=23 // pred_check
          %p671 = pneg %p227
        $region42: #{tpu_custom_call.1} parent=23 // pred_check_branch
          %673 = sbr.rel (%p671) target = $region44
        $region43: #{tpu_custom_call.1} parent=23 // pred_region
          %p674 = scmp.lt.s32.totalorder %s43, 1
          %s675 = scalar_select %p674, %s43, 1
          %p676 = scmp.lt.s32.totalorder %s675, 1
          %s677 = scalar_select %p676, %s675, 1
          %s678 = scalar_lea.vmem %s6, %s677
          %p679 = scmp.lt.s32.totalorder %s43, 1
          %s680 = scalar_select %p679, %s43, 1
        $region44: #{tpu_custom_call.1} parent=23 // pred_fallthru
          _
        // Predicated region
        $region45: #{tpu_custom_call.1} parent=23 // pred_check
          %p681 = pneg %p257
        $region46: #{tpu_custom_call.1} parent=23 // pred_check_branch
          %683 = sbr.rel (%p681) target = $region48
        $region47: #{tpu_custom_call.1} parent=23 // pred_region
          %p684 = scmp.lt.s32.totalorder %s43, 1
          %s685 = scalar_select %p684, %s43, 1
          %p686 = scmp.lt.s32.totalorder %s685, 1
          %s687 = scalar_select %p686, %s685, 1
          %s688 = smul.addr %s687, 4
          %s689 = smul.addr %s688, 4
          %s690 = scalar_lea.vmem %s7, %s689
          %p691 = scmp.lt.s32.totalorder %s43, 1
          %s692 = scalar_select %p691, %s43, 1
        $region48: #{tpu_custom_call.1} parent=23 // pred_fallthru
          _
        // Predicated region
        $region49: #{tpu_custom_call.1} parent=23 // pred_check
          %p693 = pneg %p287
        $region50: #{tpu_custom_call.1} parent=23 // pred_check_branch
          %695 = sbr.rel (%p693) target = $region52
        $region51: #{tpu_custom_call.1} parent=23 // pred_region
          %p696 = scmp.lt.s32.totalorder %s43, 1
          %s697 = scalar_select %p696, %s43, 1
          %p698 = scmp.lt.s32.totalorder %s697, 1
          %s699 = scalar_select %p698, %s697, 1
          %s700 = scalar_lea.vmem %s8, %s699
          %p701 = scmp.lt.s32.totalorder %s43, 1
          %s702 = scalar_select %p701, %s43, 1
        $region52: #{tpu_custom_call.1} parent=23 // pred_fallthru
          _
        // Predicated region
        $region53: #{tpu_custom_call.1} parent=23 // pred_check
          %p703 = pneg %p317
        $region54: #{tpu_custom_call.1} parent=23 // pred_check_branch
          %705 = sbr.rel (%p703) target = $region56
        $region55: #{tpu_custom_call.1} parent=23 // pred_region
          %p706 = scmp.lt.s32.totalorder %s43, 1
          %s707 = scalar_select %p706, %s43, 1
          %p708 = scmp.lt.s32.totalorder %s707, 1
          %s709 = scalar_select %p708, %s707, 1
          %s710 = smul.addr %s709, 4
          %s711 = smul.addr %s710, 4
          %s712 = scalar_lea.vmem %s9, %s711
          %p713 = scmp.lt.s32.totalorder %s43, 1
          %s714 = scalar_select %p713, %s43, 1
        $region56: #{tpu_custom_call.1} parent=23 // pred_fallthru
          _
        // Predicated region
        $region57: #{tpu_custom_call.1} parent=23 // pred_check
          %p715 = pneg %p347
        $region58: #{tpu_custom_call.1} parent=23 // pred_check_branch
          %717 = sbr.rel (%p715) target = $region60
        $region59: #{tpu_custom_call.1} parent=23 // pred_region
          %p718 = scmp.lt.s32.totalorder %s43, 1
          %s719 = scalar_select %p718, %s43, 1
          %p720 = scmp.lt.s32.totalorder %s719, 1
          %s721 = scalar_select %p720, %s719, 1
          %s722 = scalar_lea.vmem %s10, %s721
          %p723 = scmp.lt.s32.totalorder %s43, 1
          %s724 = scalar_select %p723, %s43, 1
        $region60: #{tpu_custom_call.1} parent=23 // pred_fallthru
          _
        // Predicated region
        $region61: #{tpu_custom_call.1} parent=23 // pred_check
          %p725 = pneg %p377
        $region62: #{tpu_custom_call.1} parent=23 // pred_check_branch
          %727 = sbr.rel (%p725) target = $region64
        $region63: #{tpu_custom_call.1} parent=23 // pred_region
          %s728 = sand.u32 %s35, 1
          %s729 = scalar_lea.sflag [#allocation11], %s728
          %s730 = sand.u32 %s367, 1
          %s731 = scalar_lea.vmem [#allocation12], %s730
          %p732 = scmp.lt.s32.totalorder %s43, 1
          %s733 = scalar_select %p732, %s43, 1
          %735 = vsyncadd %s729, 0
          %s736 = scalar_lea.hbm %s11, %s733
          %s738 = sshll.u32 %s736, 4
          %s739 = int_to_ptr.hbm [resolvable:$true] %s738
          %s740 = sshll.u32 %s731, 4
          %s741 = int_to_ptr.vmem [resolvable:$true] %s740
          %743 = dma.hbm_to_vmem [thread:$0]  %s739, 16, %s741, %s729
        $region64: #{tpu_custom_call.1} parent=23 // pred_fallthru
          _
        // Predicated region
        $region65: #{tpu_custom_call.1} parent=23 // pred_check
          %p744 = pneg %p407
        $region66: #{tpu_custom_call.1} parent=23 // pred_check_branch
          %746 = sbr.rel (%p744) target = $region68
        $region67: #{tpu_custom_call.1} parent=23 // pred_region
          %p747 = scmp.lt.s32.totalorder %s43, 1
          %s748 = scalar_select %p747, %s43, 1
          %p749 = scmp.lt.s32.totalorder %s748, 1
          %s750 = scalar_select %p749, %s748, 1
          %s751 = scalar_lea.vmem %s12, %s750
          %p752 = scmp.lt.s32.totalorder %s43, 1
          %s753 = scalar_select %p752, %s43, 1
        $region68: #{tpu_custom_call.1} parent=23 // pred_fallthru
          _
        // Predicated region
        $region69: #{tpu_custom_call.1} parent=23 // pred_check
          %p754 = pneg %p437
        $region70: #{tpu_custom_call.1} parent=23 // pred_check_branch
          %756 = sbr.rel (%p754) target = $region72
        $region71: #{tpu_custom_call.1} parent=23 // pred_region
          %p757 = scmp.lt.s32.totalorder %s43, 1
          %s758 = scalar_select %p757, %s43, 1
          %p759 = scmp.lt.s32.totalorder %s758, 1
          %s760 = scalar_select %p759, %s758, 1
          %s761 = smul.addr %s760, 4
          %s762 = smul.addr %s761, 4
          %s763 = scalar_lea.vmem %s13, %s762
          %p764 = scmp.lt.s32.totalorder %s43, 1
          %s765 = scalar_select %p764, %s43, 1
        $region72: #{tpu_custom_call.1} parent=23 // pred_fallthru
          _
        // Predicated region
        $region73: #{tpu_custom_call.1} parent=23 // pred_check
          %p766 = pneg %p467
        $region74: #{tpu_custom_call.1} parent=23 // pred_check_branch
          %768 = sbr.rel (%p766) target = $region76
        $region75: #{tpu_custom_call.1} parent=23 // pred_region
          %p769 = scmp.lt.s32.totalorder %s43, 1
          %s770 = scalar_select %p769, %s43, 1
          %p771 = scmp.lt.s32.totalorder %s770, 1
          %s772 = scalar_select %p771, %s770, 1
          %s773 = scalar_lea.vmem %s14, %s772
          %p774 = scmp.lt.s32.totalorder %s43, 1
          %s775 = scalar_select %p774, %s43, 1
        $region76: #{tpu_custom_call.1} parent=23 // pred_fallthru
          _
        // Predicated region
        $region77: #{tpu_custom_call.1} parent=23 // pred_check
          %p776 = pneg %p497
        $region78: #{tpu_custom_call.1} parent=23 // pred_check_branch
          %778 = sbr.rel (%p776) target = $region80
        $region79: #{tpu_custom_call.1} parent=23 // pred_region
          %p779 = scmp.lt.s32.totalorder %s43, 1
          %s780 = scalar_select %p779, %s43, 1
          %p781 = scmp.lt.s32.totalorder %s780, 1
          %s782 = scalar_select %p781, %s780, 1
          %s783 = smul.addr %s782, 8
          %s784 = smul.addr %s783, 4
          %s785 = scalar_lea.vmem %s15, %s784
          %p786 = scmp.lt.s32.totalorder %s43, 1
          %s787 = scalar_select %p786, %s43, 1
        $region80: #{tpu_custom_call.1} parent=23 // pred_fallthru
          _
        // Predicated region
        $region81: #{tpu_custom_call.1} parent=23 // pred_check
          %p788 = pneg %p527
        $region82: #{tpu_custom_call.1} parent=23 // pred_check_branch
          %790 = sbr.rel (%p788) target = $region84
        $region83: #{tpu_custom_call.1} parent=23 // pred_region
          %p791 = scmp.lt.s32.totalorder %s43, 1
          %s792 = scalar_select %p791, %s43, 1
          %p793 = scmp.lt.s32.totalorder %s792, 1
          %s794 = scalar_select %p793, %s792, 1
          %s795 = scalar_lea.vmem %s16, %s794
          %p796 = scmp.lt.s32.totalorder %s43, 1
          %s797 = scalar_select %p796, %s43, 1
        $region84: #{tpu_custom_call.1} parent=23 // pred_fallthru
          _
      $region24: #{tpu_custom_call.1} parent=5 // pred_fallthru
        _
      %p798 = scmp.le.s32.totalorder 1, %s35
      %p799 = scmp.lt.s32.totalorder %s35, 7
      %p800 = pnand %p798, %p799
      %p801 = pneg %p800
      // Predicated region
      $region85: #{tpu_custom_call.1} parent=5 // pred_check
        _
      $region86: #{tpu_custom_call.1} parent=5 // pred_check_branch
        %803 = sbr.rel (%p800) target = $region88
      $region87: #{tpu_custom_call.1} parent=5 // pred_region
        %s804 = ssub.s32 %s35, 1
        %s805 = sand.u32 %s60, 1
        %s806 = scalar_lea.sflag [#allocation5], %s805
        %s807 = sand.u32 %s60, 1
        %s808 = smul.addr %s807, 8
        %s809 = scalar_lea.vmem [#allocation4], %s808
        // Predicated region
        $region89: #{tpu_custom_call.1} parent=87 // pred_check
          %p810 = pneg %p73
        $region90: #{tpu_custom_call.1} parent=87 // pred_check_branch
          %812 = sbr.rel (%p810) target = $region92
        $region91: #{tpu_custom_call.1} parent=87 // pred_region
          %814 = dma.done %s806, 128
        $region92: #{tpu_custom_call.1} parent=87 // pred_fallthru
          _
        %s815 = sand.u32 %s40, 1
        %s816 = scalar_lea.sflag [#allocation8], %s815
        %s817 = sand.u32 %s86, 1
        %s818 = scalar_lea.vmem [#allocation7], %s817
        // Predicated region
        $region93: #{tpu_custom_call.1} parent=87 // pred_check
          %p819 = pneg %p99
        $region94: #{tpu_custom_call.1} parent=87 // pred_check_branch
          %821 = sbr.rel (%p819) target = $region96
        $region95: #{tpu_custom_call.1} parent=87 // pred_region
          %823 = dma.done %s816, 16
        $region96: #{tpu_custom_call.1} parent=87 // pred_fallthru
          _
        // Predicated region
        $region97: #{tpu_custom_call.1} parent=87 // pred_check
          %p824 = pneg %p141
        $region98: #{tpu_custom_call.1} parent=87 // pred_check_branch
          %826 = sbr.rel (%p824) target = $region100
        $region99: #{tpu_custom_call.1} parent=87 // pred_region
          %828 = dma.done [#allocation8], 16
        $region100: #{tpu_custom_call.1} parent=87 // pred_fallthru
          _
        %s829 = sand.u32 %s40, 1
        %s830 = scalar_lea.sflag [#allocation11], %s829
        %s831 = sand.u32 %s160, 1
        %s832 = smul.addr %s831, 16
        %s833 = scalar_lea.vmem [#allocation10], %s832
        // Predicated region
        $region101: #{tpu_custom_call.1} parent=87 // pred_check
          %p834 = pneg %p173
        $region102: #{tpu_custom_call.1} parent=87 // pred_check_branch
          %836 = sbr.rel (%p834) target = $region104
        $region103: #{tpu_custom_call.1} parent=87 // pred_region
          %838 = dma.done %s830, 256
        $region104: #{tpu_custom_call.1} parent=87 // pred_fallthru
          _
        %s839 = sand.u32 %s40, 1
        %s840 = scalar_lea.sflag [#allocation11], %s839
        %s841 = sand.u32 %s370, 1
        %s842 = scalar_lea.vmem [#allocation12], %s841
        // Predicated region
        $region105: #{tpu_custom_call.1} parent=87 // pred_check
          %p843 = pneg %p383
        $region106: #{tpu_custom_call.1} parent=87 // pred_check_branch
          %845 = sbr.rel (%p843) target = $region108
        $region107: #{tpu_custom_call.1} parent=87 // pred_region
          %847 = dma.done %s840, 16
        $region108: #{tpu_custom_call.1} parent=87 // pred_fallthru
          _
        %s848 = sand.u32 %s60, 1
        %s849 = scalar_lea.sflag [#allocation5], %s848
        %s850 = sand.u32 %s60, 1
        %s851 = smul.addr %s850, 8
        %s852 = scalar_lea.vmem [#allocation4], %s851
        %p853 = pneg %p73
        %p854 = pneg %p70
        %s855 = sand.u32 %s40, 1
        %s856 = scalar_lea.sflag [#allocation8], %s855
        %s857 = sand.u32 %s86, 1
        %s858 = scalar_lea.vmem [#allocation7], %s857
        %p859 = pneg %p99
        %p860 = pneg %p96
        %p861 = pneg %p120
        %p862 = pneg %p117
        %p863 = pneg %p141
        %p864 = pneg %p138
        %s865 = sand.u32 %s40, 1
        %s866 = scalar_lea.sflag [#allocation11], %s865
        %s867 = sand.u32 %s160, 1
        %s868 = smul.addr %s867, 16
        %s869 = scalar_lea.vmem [#allocation10], %s868
        %p870 = pneg %p173
        %p871 = pneg %p170
        %p872 = scmp.lt.s32.totalorder %s45, 1
        %s873 = scalar_select %p872, %s45, 1
        %p874 = scmp.lt.s32.totalorder %s873, 1
        %s875 = scalar_select %p874, %s873, 1
        %s876 = scalar_lea.vmem %s5, %s875
        %p877 = pneg %p203
        %p878 = pneg %p200
        %p879 = scmp.lt.s32.totalorder %s45, 1
        %s880 = scalar_select %p879, %s45, 1
        %p881 = scmp.lt.s32.totalorder %s880, 1
        %s882 = scalar_select %p881, %s880, 1
        %s883 = scalar_lea.vmem %s6, %s882
        %p884 = pneg %p233
        %p885 = pneg %p230
        %p886 = scmp.lt.s32.totalorder %s45, 1
        %s887 = scalar_select %p886, %s45, 1
        %p888 = scmp.lt.s32.totalorder %s887, 1
        %s889 = scalar_select %p888, %s887, 1
        %s890 = smul.addr %s889, 4
        %s891 = smul.addr %s890, 4
        %s892 = scalar_lea.vmem %s7, %s891
        %p893 = pneg %p263
        %p894 = pneg %p260
        %p895 = scmp.lt.s32.totalorder %s45, 1
        %s896 = scalar_select %p895, %s45, 1
        %p897 = scmp.lt.s32.totalorder %s896, 1
        %s898 = scalar_select %p897, %s896, 1
        %s899 = scalar_lea.vmem %s8, %s898
        %p900 = pneg %p293
        %p901 = pneg %p290
        %p902 = scmp.lt.s32.totalorder %s45, 1
        %s903 = scalar_select %p902, %s45, 1
        %p904 = scmp.lt.s32.totalorder %s903, 1
        %s905 = scalar_select %p904, %s903, 1
        %s906 = smul.addr %s905, 4
        %s907 = smul.addr %s906, 4
        %s908 = scalar_lea.vmem %s9, %s907
        %p909 = pneg %p323
        %p910 = pneg %p320
        %p911 = scmp.lt.s32.totalorder %s45, 1
        %s912 = scalar_select %p911, %s45, 1
        %p913 = scmp.lt.s32.totalorder %s912, 1
        %s914 = scalar_select %p913, %s912, 1
        %s915 = scalar_lea.vmem %s10, %s914
        %p916 = pneg %p353
        %p917 = pneg %p350
        %s918 = sand.u32 %s40, 1
        %s919 = scalar_lea.sflag [#allocation11], %s918
        %s920 = sand.u32 %s370, 1
        %s921 = scalar_lea.vmem [#allocation12], %s920
        %p922 = pneg %p383
        %p923 = pneg %p380
        %p924 = scmp.lt.s32.totalorder %s45, 1
        %s925 = scalar_select %p924, %s45, 1
        %p926 = scmp.lt.s32.totalorder %s925, 1
        %s927 = scalar_select %p926, %s925, 1
        %s928 = scalar_lea.vmem %s12, %s927
        %p929 = pneg %p413
        %p930 = pneg %p410
        %p931 = scmp.lt.s32.totalorder %s45, 1
        %s932 = scalar_select %p931, %s45, 1
        %p933 = scmp.lt.s32.totalorder %s932, 1
        %s934 = scalar_select %p933, %s932, 1
        %s935 = smul.addr %s934, 4
        %s936 = smul.addr %s935, 4
        %s937 = scalar_lea.vmem %s13, %s936
        %p938 = pneg %p443
        %p939 = pneg %p440
        %p940 = scmp.lt.s32.totalorder %s45, 1
        %s941 = scalar_select %p940, %s45, 1
        %p942 = scmp.lt.s32.totalorder %s941, 1
        %s943 = scalar_select %p942, %s941, 1
        %s944 = scalar_lea.vmem %s14, %s943
        %p945 = pneg %p473
        %p946 = pneg %p470
        %p947 = scmp.lt.s32.totalorder %s45, 1
        %s948 = scalar_select %p947, %s45, 1
        %p949 = scmp.lt.s32.totalorder %s948, 1
        %s950 = scalar_select %p949, %s948, 1
        %s951 = smul.addr %s950, 8
        %s952 = smul.addr %s951, 4
        %s953 = scalar_lea.vmem %s15, %s952
        %p954 = pneg %p503
        %p955 = pneg %p500
        %p956 = scmp.lt.s32.totalorder %s45, 1
        %s957 = scalar_select %p956, %s45, 1
        %p958 = scmp.lt.s32.totalorder %s957, 1
        %s959 = scalar_select %p958, %s957, 1
        %s960 = scalar_lea.vmem %s16, %s959
        %p961 = pneg %p533
        %p962 = pneg %p530
        %p963 = pneg %p567
        %p964 = pneg %p564
        %s965 = sand.u32 %s554, 1
        %s966 = scalar_lea.sflag [#allocation6], %s965
        %s967 = sand.u32 %s554, 1
        %s968 = smul.addr %s967, 8
        %s969 = scalar_lea.vmem [#allocation13], %s968
        %s970 = ssub.s32 %s45, 2
        %p971 = scmp.gt.s32.totalorder %s970, 0
        %s972 = scalar_select %p971, %s970, 0
        %p973 = scmp.lt.s32.totalorder %s45, 1
        %s974 = scalar_select %p973, %s45, 1
        %p975 = scmp.lt.s32.totalorder %s974, 1
        %s976 = scalar_select %p975, %s974, 1
        %s977 = scalar_lea.vmem %s5, %s976
        %p978 = scmp.lt.s32.totalorder %s45, 1
        %s979 = scalar_select %p978, %s45, 1
        %p980 = scmp.lt.s32.totalorder %s45, 1
        %s981 = scalar_select %p980, %s45, 1
        %p982 = scmp.lt.s32.totalorder %s981, 1
        %s983 = scalar_select %p982, %s981, 1
        %s984 = scalar_lea.vmem %s6, %s983
        %p985 = scmp.lt.s32.totalorder %s45, 1
        %s986 = scalar_select %p985, %s45, 1
        %p987 = scmp.lt.s32.totalorder %s45, 1
        %s988 = scalar_select %p987, %s45, 1
        %p989 = scmp.lt.s32.totalorder %s988, 1
        %s990 = scalar_select %p989, %s988, 1
        %s991 = smul.addr %s990, 4
        %s992 = smul.addr %s991, 4
        %s993 = scalar_lea.vmem %s7, %s992
        %p994 = scmp.lt.s32.totalorder %s45, 1
        %s995 = scalar_select %p994, %s45, 1
        %p996 = scmp.lt.s32.totalorder %s45, 1
        %s997 = scalar_select %p996, %s45, 1
        %p998 = scmp.lt.s32.totalorder %s997, 1
        %s999 = scalar_select %p998, %s997, 1
        %s1000 = scalar_lea.vmem %s8, %s999
        %p1001 = scmp.lt.s32.totalorder %s45, 1
        %s1002 = scalar_select %p1001, %s45, 1
        %p1003 = scmp.lt.s32.totalorder %s45, 1
        %s1004 = scalar_select %p1003, %s45, 1
        %p1005 = scmp.lt.s32.totalorder %s1004, 1
        %s1006 = scalar_select %p1005, %s1004, 1
        %s1007 = smul.addr %s1006, 4
        %s1008 = smul.addr %s1007, 4
        %s1009 = scalar_lea.vmem %s9, %s1008
        %p1010 = scmp.lt.s32.totalorder %s45, 1
        %s1011 = scalar_select %p1010, %s45, 1
        %p1012 = scmp.lt.s32.totalorder %s45, 1
        %s1013 = scalar_select %p1012, %s45, 1
        %p1014 = scmp.lt.s32.totalorder %s1013, 1
        %s1015 = scalar_select %p1014, %s1013, 1
        %s1016 = scalar_lea.vmem %s10, %s1015
        %p1017 = scmp.lt.s32.totalorder %s45, 1
        %s1018 = scalar_select %p1017, %s45, 1
        %p1019 = scmp.lt.s32.totalorder %s45, 1
        %s1020 = scalar_select %p1019, %s45, 1
        %p1021 = scmp.lt.s32.totalorder %s45, 1
        %s1022 = scalar_select %p1021, %s45, 1
        %p1023 = scmp.lt.s32.totalorder %s1022, 1
        %s1024 = scalar_select %p1023, %s1022, 1
        %s1025 = scalar_lea.vmem %s12, %s1024
        %p1026 = scmp.lt.s32.totalorder %s45, 1
        %s1027 = scalar_select %p1026, %s45, 1
        %p1028 = scmp.lt.s32.totalorder %s45, 1
        %s1029 = scalar_select %p1028, %s45, 1
        %p1030 = scmp.lt.s32.totalorder %s1029, 1
        %s1031 = scalar_select %p1030, %s1029, 1
        %s1032 = smul.addr %s1031, 4
        %s1033 = smul.addr %s1032, 4
        %s1034 = scalar_lea.vmem %s13, %s1033
        %p1035 = scmp.lt.s32.totalorder %s45, 1
        %s1036 = scalar_select %p1035, %s45, 1
        %p1037 = scmp.lt.s32.totalorder %s45, 1
        %s1038 = scalar_select %p1037, %s45, 1
        %p1039 = scmp.lt.s32.totalorder %s1038, 1
        %s1040 = scalar_select %p1039, %s1038, 1
        %s1041 = scalar_lea.vmem %s14, %s1040
        %p1042 = scmp.lt.s32.totalorder %s45, 1
        %s1043 = scalar_select %p1042, %s45, 1
        %p1044 = scmp.lt.s32.totalorder %s45, 1
        %s1045 = scalar_select %p1044, %s45, 1
        %p1046 = scmp.lt.s32.totalorder %s1045, 1
        %s1047 = scalar_select %p1046, %s1045, 1
        %s1048 = smul.addr %s1047, 8
        %s1049 = smul.addr %s1048, 4
        %s1050 = scalar_lea.vmem %s15, %s1049
        %p1051 = scmp.lt.s32.totalorder %s45, 1
        %s1052 = scalar_select %p1051, %s45, 1
        %p1053 = scmp.lt.s32.totalorder %s45, 1
        %s1054 = scalar_select %p1053, %s45, 1
        %p1055 = scmp.lt.s32.totalorder %s1054, 1
        %s1056 = scalar_select %p1055, %s1054, 1
        %s1057 = scalar_lea.vmem %s16, %s1056
        %p1058 = scmp.lt.s32.totalorder %s45, 1
        %s1059 = scalar_select %p1058, %s45, 1
        %s1060 = ssub.s32 %s45, 2
        %p1061 = scmp.gt.s32.totalorder %s1060, 0
        %s1062 = scalar_select %p1061, %s1060, 0
        %p1064 = scmp.eq.s32.totalorder %s45, 0
        // Predicated region
        $region109: #{tpu_custom_call.1} parent=87 // pred_check
          %p1065 = pneg %p1064
        $region110: #{tpu_custom_call.1} parent=87 // pred_check_branch
          %1067 = sbr.rel (%p1065) target = $region112
        $region111: #{tpu_custom_call.1} parent=87 // pred_region
          %v1068 = vld [vmem:[%s809] sm:$0xff]
          %vm1069 = vcmask 261120
          %1070 = vst.msk [vmem:[#allocation2] sm:$0xff] %vm1069, %v1068
          %v1071 = vlaneseq
          %v1072 = vshrl.u32 %v1071, 7
          %v1073 = vlaneseq
          %v1074 = vand.u32 %v1073, 127
          %vm1075 = vcmp.gt.s32.totalorder %v1074, %v1072
          %v1076 = vld [vmem:[%s818] sm:$0x1]
          %vm1077 = vcmp.gt.f32.partialorder %v1076, 0.5
          %v1078 = vsel %vm1077, 1, 0
          %v1079 = vperm.slane %v1078, 0
          %vm1080 = vcmp.eq.s32.totalorder %v1079, 1
          %vm1081 = vmor %vm1075, %vm1080
          %v1082 = vsel %vm1081, -1e+30, 0.0
          %vm1083 = vcmask 64512
          %1084 = vst.msk [vmem:[#allocation3] sm:$0xff] %vm1083, %v1082
        $region112: #{tpu_custom_call.1} parent=87 // pred_fallthru
          _
        %p1085 = scmp.lt.s32.totalorder %s45, 2
        // Predicated region
        $region113: #{tpu_custom_call.1} parent=87 // pred_check
          %p1086 = pneg %p1085
        $region114: #{tpu_custom_call.1} parent=87 // pred_check_branch
          %1088 = sbr.rel (%p1086) target = $region116
        $region115: #{tpu_custom_call.1} parent=87 // pred_region
          %v1089 = vld [vmem:[#allocation2] sm:$0xff]
          %v1090 = vld [vmem:[%s977] sm:$0x1]
          %v1091 = vld [vmem:[%s984] sm:$0x1]
          %vm1092 = vcmask 261120
          %v1093 = vsel %vm1092, %v1089, 0.0
          %1094 = vadd.xlane.f32.xlu0 %v1093
          %v1095 = vpop.xlane.xlu0 %1094
          %v1096 = vrcp.pop 32.0
          %v1097 = vmul.f32 32.0, %v1096
          %v1098 = vsub.f32 1.0, %v1097
          %v1099 = vmul.f32 %v1096, %v1098
          %v1100 = vadd.f32 %v1096, %v1099
          %vm1101 = vweird.f32 %v1096
          %v1102 = vsel %vm1101, %v1096, %v1100
          %v1103 = vmul.f32 %v1095, %v1102
          %v1104 = vsub.f32 %v1089, %v1103
          %v1105 = vmul.f32 %v1104, %v1104
          %v1106 = vsel %vm1092, %v1105, 0.0
          %1107 = vadd.xlane.f32.xlu0 %v1106
          %v1108 = vpop.xlane.xlu0 %1107
          %v1109 = vmul.f32 %v1108, %v1102
          %v1110 = vadd.f32 %v1109, 1e-05
          %v1111 = vrsqrt.pop %v1110
          %v1112 = vmul.f32 %v1111, %v1110
          %v1113 = vmul.f32 %v1112, %v1111
          %v1114 = vmul.f32 0.5, %v1113
          %v1115 = vsub.f32 1.5, %v1114
          %v1116 = vmul.f32 %v1111, %v1115
          %vm1117 = vweird.f32 %v1110
          %vm1118 = vweird.f32 %v1111
          %vm1119 = vmor %vm1117, %vm1118
          %v1120 = vsel %vm1119, %v1111, %v1116
          %v1121 = vmul.f32 %v1104, %v1120
          %v1123 = vperm.slane %v1090, 0
          %v1125 = vmul.f32 %v1121, %v1123
          %v1127 = vperm.slane %v1091, 0
          %v1129 = vadd.f32 %v1125, %v1127
          %v1130 = vpack.c.bf16 %v1129, %v1129
          %v1131 = vld [vmem:[%s993] sm:$0xf]
          %v1132 = vld [vmem:[%s993 + $0x4] sm:$0xf]
          %v1133 = vld [vmem:[%s993 + $0x8] sm:$0xf]
          %v1134 = vld [vmem:[%s993 + $0xc] sm:$0xf]
          %v1135 = vld [vmem:[%s1000] sm:$0x1]
          %v1137 = vperm.slane %v1135, 0
          %v1143 = vunpack.c.l.b16 %v1131
          %v1144 = vunpack.c.l.b16 %v1132
          %v1145 = vunpack.c.l.b16 %v1133
          %v1146 = vunpack.c.l.b16 %v1134
          %v1147 = vpack.c.b16 %v1144, %v1143
          %v1148 = vpack.c.b16 %v1146, %v1145
          %v1152 = vsel %vm1092, %v1130, 0
          %1154 = vmatpush.bf16.msra.mxu0 0
          %1155 = vmatpush.bf16.msra.mxu0 0
          %1156 = vmatpush.bf16.msra.mxu0 0
          %1157 = vmatpush.bf16.msra.mxu0 0
          %1158 = vmatpush.bf16.msra.mxu0 0
          %1159 = vmatpush.bf16.msra.mxu0 0
          %1160 = vmatpush.bf16.msra.mxu0 %v1148
          %1161 = vmatpush.bf16.msra.mxu0 %v1147
          %1162 = vmatmul.bf16.gmra.mxu0 %v1152
          %v1163 = vpop.f32.mrf.mxu0
          %v1164 = vadd.f32 %v1137, %v1163
          %v1165 = vpop.f32.mrf.mxu0
          %1166 = vdwg.mxu0
          %v1167 = vmul.f32 %v1164, 0.35355338
          %1169 = vrot.lane.b32.xlu0 %v1167, 120
          %v1170 = vpop.permute.xlu0 %1169
          %1172 = vrot.lane.b32.xlu0 %v1167, 112
          %v1173 = vpop.permute.xlu0 %1172
          %1175 = vrot.lane.b32.xlu0 %v1167, 104
          %v1176 = vpop.permute.xlu0 %1175
          %v1178 = vrot.slane %v1173, 4
          %vm1179 = vcmask 1047556
          %v1180 = vsel %vm1179, %v1178, %v1167
          %v1181 = vrot.slane %v1167, 4
          %v1182 = vsel %vm1179, %v1173, %v1181
          %v1184 = vunpack.c.l.s4 1983009808
          %v1185 = vunpack.c.0.s8 %v1184
          %v1186 = vperm.slane %v1180, %v1185
          %v1188 = vunpack.c.l.s4 1983009808
          %v1189 = vunpack.c.0.s8 %v1188
          %v1190 = vperm.slane %v1182, %v1189
          %v1191 = vrot.slane %v1176, 4
          %v1192 = vsel %vm1179, %v1191, %v1170
          %v1193 = vrot.slane %v1170, 4
          %v1194 = vsel %vm1179, %v1176, %v1193
          %v1196 = vunpack.c.l.s4 1983009808
          %v1197 = vunpack.c.0.s8 %v1196
          %v1198 = vperm.slane %v1192, %v1197
          %v1200 = vunpack.c.l.s4 1983009808
          %v1201 = vunpack.c.0.s8 %v1200
          %v1202 = vperm.slane %v1194, %v1201
          %v1203 = vrot.slane %v1198, 4
          %v1204 = vsel %vm1179, %v1203, %v1186
          %v1205 = vrot.slane %v1186, 4
          %v1206 = vsel %vm1179, %v1198, %v1205
          %v1208 = vunpack.c.l.s4 1934713408
          %v1209 = vunpack.c.0.s8 %v1208
          %v1210 = vperm.slane %v1204, %v1209
          %v1212 = vunpack.c.l.s4 1934713408
          %v1213 = vunpack.c.0.s8 %v1212
          %v1214 = vperm.slane %v1206, %v1213
          %v1215 = vrot.slane %v1202, 4
          %v1216 = vsel %vm1179, %v1215, %v1190
          %v1217 = vrot.slane %v1190, 4
          %v1218 = vsel %vm1179, %v1202, %v1217
          %v1220 = vunpack.c.l.s4 1934713408
          %v1221 = vunpack.c.0.s8 %v1220
          %v1222 = vperm.slane %v1216, %v1221
          %v1224 = vunpack.c.l.s4 1934713408
          %v1225 = vunpack.c.0.s8 %v1224
          %v1226 = vperm.slane %v1218, %v1225
          %v1227 = vrot.slane %v1210, 4
          %v1228 = vsel %vm1179, 0.0, %v1227
          %v1229 = vrot.slane %v1214, 4
          %v1230 = vsel %vm1179, 0.0, %v1229
          %v1231 = vrot.slane %v1222, 4
          %v1232 = vsel %vm1179, 0.0, %v1231
          %v1233 = vrot.slane %v1226, 4
          %v1234 = vsel %vm1179, 0.0, %v1233
          %1236 = vrot.lane.b32.xlu0 %v1164, 120
          %v1237 = vpop.permute.xlu0 %1236
          %1238 = vrot.lane.b32.xlu0 %v1164, 112
          %v1239 = vpop.permute.xlu0 %1238
          %1240 = vrot.lane.b32.xlu0 %v1164, 104
          %v1241 = vpop.permute.xlu0 %1240
          %1242 = vrot.lane.b32.xlu0 %v1164, 96
          %v1243 = vpop.permute.xlu0 %1242
          %1244 = vrot.lane.b32.xlu0 %v1237, 96
          %v1245 = vpop.permute.xlu0 %1244
          %1246 = vrot.lane.b32.xlu0 %v1239, 96
          %v1247 = vpop.permute.xlu0 %1246
          %1248 = vrot.lane.b32.xlu0 %v1241, 96
          %v1249 = vpop.permute.xlu0 %1248
          %v1254 = vrot.slane %v1247, 4
          %v1255 = vsel %vm1179, %v1254, %v1243
          %v1256 = vrot.slane %v1243, 4
          %v1257 = vsel %vm1179, %v1247, %v1256
          %v1259 = vunpack.c.l.s4 1983009808
          %v1260 = vunpack.c.0.s8 %v1259
          %v1261 = vperm.slane %v1255, %v1260
          %v1263 = vunpack.c.l.s4 1983009808
          %v1264 = vunpack.c.0.s8 %v1263
          %v1265 = vperm.slane %v1257, %v1264
          %v1266 = vrot.slane %v1249, 4
          %v1267 = vsel %vm1179, %v1266, %v1245
          %v1268 = vrot.slane %v1245, 4
          %v1269 = vsel %vm1179, %v1249, %v1268
          %v1271 = vunpack.c.l.s4 1983009808
          %v1272 = vunpack.c.0.s8 %v1271
          %v1273 = vperm.slane %v1267, %v1272
          %v1275 = vunpack.c.l.s4 1983009808
          %v1276 = vunpack.c.0.s8 %v1275
          %v1277 = vperm.slane %v1269, %v1276
          %v1278 = vrot.slane %v1273, 4
          %v1279 = vsel %vm1179, %v1278, %v1261
          %v1280 = vrot.slane %v1261, 4
          %v1281 = vsel %vm1179, %v1273, %v1280
          %v1283 = vunpack.c.l.s4 1934713408
          %v1284 = vunpack.c.0.s8 %v1283
          %v1285 = vperm.slane %v1279, %v1284
          %v1287 = vunpack.c.l.s4 1934713408
          %v1288 = vunpack.c.0.s8 %v1287
          %v1289 = vperm.slane %v1281, %v1288
          %v1290 = vrot.slane %v1277, 4
          %v1291 = vsel %vm1179, %v1290, %v1265
          %v1292 = vrot.slane %v1265, 4
          %v1293 = vsel %vm1179, %v1277, %v1292
          %v1295 = vunpack.c.l.s4 1934713408
          %v1296 = vunpack.c.0.s8 %v1295
          %v1297 = vperm.slane %v1291, %v1296
          %v1299 = vunpack.c.l.s4 1934713408
          %v1300 = vunpack.c.0.s8 %v1299
          %v1301 = vperm.slane %v1293, %v1300
          %v1302 = vrot.slane %v1285, 4
          %v1303 = vsel %vm1179, 0.0, %v1302
          %v1304 = vrot.slane %v1289, 4
          %v1305 = vsel %vm1179, 0.0, %v1304
          %v1306 = vrot.slane %v1297, 4
          %v1307 = vsel %vm1179, 0.0, %v1306
          %v1308 = vrot.slane %v1301, 4
          %v1309 = vsel %vm1179, 0.0, %v1308
          %1310 = vrot.lane.b32.xlu0 %v1164, 64
          %v1311 = vpop.permute.xlu0 %1310
          %1312 = vrot.lane.b32.xlu0 %v1237, 64
          %v1313 = vpop.permute.xlu0 %1312
          %1314 = vrot.lane.b32.xlu0 %v1239, 64
          %v1315 = vpop.permute.xlu0 %1314
          %1316 = vrot.lane.b32.xlu0 %v1241, 64
          %v1317 = vpop.permute.xlu0 %1316
          %v1322 = vrot.slane %v1315, 4
          %v1323 = vsel %vm1179, %v1322, %v1311
          %v1324 = vrot.slane %v1311, 4
          %v1325 = vsel %vm1179, %v1315, %v1324
          %v1327 = vunpack.c.l.s4 1983009808
          %v1328 = vunpack.c.0.s8 %v1327
          %v1329 = vperm.slane %v1323, %v1328
          %v1331 = vunpack.c.l.s4 1983009808
          %v1332 = vunpack.c.0.s8 %v1331
          %v1333 = vperm.slane %v1325, %v1332
          %v1334 = vrot.slane %v1317, 4
          %v1335 = vsel %vm1179, %v1334, %v1313
          %v1336 = vrot.slane %v1313, 4
          %v1337 = vsel %vm1179, %v1317, %v1336
          %v1339 = vunpack.c.l.s4 1983009808
          %v1340 = vunpack.c.0.s8 %v1339
          %v1341 = vperm.slane %v1335, %v1340
          %v1343 = vunpack.c.l.s4 1983009808
          %v1344 = vunpack.c.0.s8 %v1343
          %v1345 = vperm.slane %v1337, %v1344
          %v1346 = vrot.slane %v1341, 4
          %v1347 = vsel %vm1179, %v1346, %v1329
          %v1348 = vrot.slane %v1329, 4
          %v1349 = vsel %vm1179, %v1341, %v1348
          %v1351 = vunpack.c.l.s4 1934713408
          %v1352 = vunpack.c.0.s8 %v1351
          %v1353 = vperm.slane %v1347, %v1352
          %v1355 = vunpack.c.l.s4 1934713408
          %v1356 = vunpack.c.0.s8 %v1355
          %v1357 = vperm.slane %v1349, %v1356
          %v1358 = vrot.slane %v1345, 4
          %v1359 = vsel %vm1179, %v1358, %v1333
          %v1360 = vrot.slane %v1333, 4
          %v1361 = vsel %vm1179, %v1345, %v1360
          %v1363 = vunpack.c.l.s4 1934713408
          %v1364 = vunpack.c.0.s8 %v1363
          %v1365 = vperm.slane %v1359, %v1364
          %v1367 = vunpack.c.l.s4 1934713408
          %v1368 = vunpack.c.0.s8 %v1367
          %v1369 = vperm.slane %v1361, %v1368
          %v1370 = vrot.slane %v1353, 4
          %v1371 = vsel %vm1179, 0.0, %v1370
          %v1372 = vrot.slane %v1357, 4
          %v1373 = vsel %vm1179, 0.0, %v1372
          %v1374 = vrot.slane %v1365, 4
          %v1375 = vsel %vm1179, 0.0, %v1374
          %v1376 = vrot.slane %v1369, 4
          %v1377 = vsel %vm1179, 0.0, %v1376
          %v1378 = vsel %vm1179, %v1229, %v1210
          %v1380 = vunpack.c.l.s4 1983009808
          %v1381 = vunpack.c.0.s8 %v1380
          %v1382 = vperm.slane %v1378, %v1381
          %v1383 = vrot.slane %v1230, 4
          %v1384 = vsel %vm1179, %v1383, %v1228
          %v1386 = vunpack.c.l.s4 1983009808
          %v1387 = vunpack.c.0.s8 %v1386
          %v1388 = vperm.slane %v1384, %v1387
          %v1389 = vsel %vm1179, %v1233, %v1222
          %v1391 = vunpack.c.l.s4 1983009808
          %v1392 = vunpack.c.0.s8 %v1391
          %v1393 = vperm.slane %v1389, %v1392
          %v1394 = vrot.slane %v1234, 4
          %v1395 = vsel %vm1179, %v1394, %v1232
          %v1397 = vunpack.c.l.s4 1983009808
          %v1398 = vunpack.c.0.s8 %v1397
          %v1399 = vperm.slane %v1395, %v1398
          %v1400 = vrot.slane %v1388, 4
          %v1401 = vsel %vm1179, %v1400, %v1382
          %v1402 = vrot.slane %v1382, 4
          %v1403 = vsel %vm1179, %v1388, %v1402
          %v1405 = vunpack.c.l.s4 1934713408
          %v1406 = vunpack.c.0.s8 %v1405
          %v1407 = vperm.slane %v1401, %v1406
          %v1409 = vunpack.c.l.s4 1934713408
          %v1410 = vunpack.c.0.s8 %v1409
          %v1411 = vperm.slane %v1403, %v1410
          %v1412 = vrot.slane %v1399, 4
          %v1413 = vsel %vm1179, %v1412, %v1393
          %v1414 = vrot.slane %v1393, 4
          %v1415 = vsel %vm1179, %v1399, %v1414
          %v1417 = vunpack.c.l.s4 1934713408
          %v1418 = vunpack.c.0.s8 %v1417
          %v1419 = vperm.slane %v1413, %v1418
          %v1421 = vunpack.c.l.s4 1934713408
          %v1422 = vunpack.c.0.s8 %v1421
          %v1423 = vperm.slane %v1415, %v1422
          %v1424 = vrot.slane %v1419, 4
          %v1425 = vsel %vm1179, %v1424, %v1407
          %v1426 = vrot.slane %v1407, 4
          %v1427 = vsel %vm1179, %v1419, %v1426
          %v1428 = vrot.slane %v1423, 4
          %v1429 = vsel %vm1179, %v1428, %v1411
          %v1430 = vrot.slane %v1411, 4
          %v1431 = vsel %vm1179, %v1423, %v1430
          %v1432 = vpack.c.bf16 %v1425, %v1425
          %v1433 = vpack.c.bf16 %v1427, %v1427
          %v1434 = vpack.c.bf16 %v1429, %v1429
          %v1435 = vpack.c.bf16 %v1431, %v1431
          %v1436 = vsel %vm1179, %v1304, %v1285
          %v1438 = vunpack.c.l.s4 1983009808
          %v1439 = vunpack.c.0.s8 %v1438
          %v1440 = vperm.slane %v1436, %v1439
          %v1441 = vrot.slane %v1305, 4
          %v1442 = vsel %vm1179, %v1441, %v1303
          %v1444 = vunpack.c.l.s4 1983009808
          %v1445 = vunpack.c.0.s8 %v1444
          %v1446 = vperm.slane %v1442, %v1445
          %v1447 = vsel %vm1179, %v1308, %v1297
          %v1449 = vunpack.c.l.s4 1983009808
          %v1450 = vunpack.c.0.s8 %v1449
          %v1451 = vperm.slane %v1447, %v1450
          %v1452 = vrot.slane %v1309, 4
          %v1453 = vsel %vm1179, %v1452, %v1307
          %v1455 = vunpack.c.l.s4 1983009808
          %v1456 = vunpack.c.0.s8 %v1455
          %v1457 = vperm.slane %v1453, %v1456
          %v1458 = vrot.slane %v1446, 4
          %v1459 = vsel %vm1179, %v1458, %v1440
          %v1460 = vrot.slane %v1440, 4
          %v1461 = vsel %vm1179, %v1446, %v1460
          %v1463 = vunpack.c.l.s4 1934713408
          %v1464 = vunpack.c.0.s8 %v1463
          %v1465 = vperm.slane %v1459, %v1464
          %v1467 = vunpack.c.l.s4 1934713408
          %v1468 = vunpack.c.0.s8 %v1467
          %v1469 = vperm.slane %v1461, %v1468
          %v1470 = vrot.slane %v1457, 4
          %v1471 = vsel %vm1179, %v1470, %v1451
          %v1472 = vrot.slane %v1451, 4
          %v1473 = vsel %vm1179, %v1457, %v1472
          %v1475 = vunpack.c.l.s4 1934713408
          %v1476 = vunpack.c.0.s8 %v1475
          %v1477 = vperm.slane %v1471, %v1476
          %v1479 = vunpack.c.l.s4 1934713408
          %v1480 = vunpack.c.0.s8 %v1479
          %v1481 = vperm.slane %v1473, %v1480
          %v1482 = vrot.slane %v1477, 4
          %v1483 = vsel %vm1179, %v1482, %v1465
          %v1484 = vrot.slane %v1465, 4
          %v1485 = vsel %vm1179, %v1477, %v1484
          %v1486 = vrot.slane %v1481, 4
          %v1487 = vsel %vm1179, %v1486, %v1469
          %v1488 = vrot.slane %v1469, 4
          %v1489 = vsel %vm1179, %v1481, %v1488
          %v1490 = vpack.c.bf16 %v1483, %v1483
          %v1491 = vpack.c.bf16 %v1485, %v1485
          %v1492 = vpack.c.bf16 %v1487, %v1487
          %v1493 = vpack.c.bf16 %v1489, %v1489
          %v1494 = vsel %vm1179, %v1372, %v1353
          %v1496 = vunpack.c.l.s4 1983009808
          %v1497 = vunpack.c.0.s8 %v1496
          %v1498 = vperm.slane %v1494, %v1497
          %v1499 = vrot.slane %v1373, 4
          %v1500 = vsel %vm1179, %v1499, %v1371
          %v1502 = vunpack.c.l.s4 1983009808
          %v1503 = vunpack.c.0.s8 %v1502
          %v1504 = vperm.slane %v1500, %v1503
          %v1505 = vsel %vm1179, %v1376, %v1365
          %v1507 = vunpack.c.l.s4 1983009808
          %v1508 = vunpack.c.0.s8 %v1507
          %v1509 = vperm.slane %v1505, %v1508
          %v1510 = vrot.slane %v1377, 4
          %v1511 = vsel %vm1179, %v1510, %v1375
          %v1513 = vunpack.c.l.s4 1983009808
          %v1514 = vunpack.c.0.s8 %v1513
          %v1515 = vperm.slane %v1511, %v1514
          %v1516 = vrot.slane %v1504, 4
          %v1517 = vsel %vm1179, %v1516, %v1498
          %v1518 = vrot.slane %v1498, 4
          %v1519 = vsel %vm1179, %v1504, %v1518
          %v1521 = vunpack.c.l.s4 1934713408
          %v1522 = vunpack.c.0.s8 %v1521
          %v1523 = vperm.slane %v1517, %v1522
          %v1525 = vunpack.c.l.s4 1934713408
          %v1526 = vunpack.c.0.s8 %v1525
          %v1527 = vperm.slane %v1519, %v1526
          %v1528 = vrot.slane %v1515, 4
          %v1529 = vsel %vm1179, %v1528, %v1509
          %v1530 = vrot.slane %v1509, 4
          %v1531 = vsel %vm1179, %v1515, %v1530
          %v1533 = vunpack.c.l.s4 1934713408
          %v1534 = vunpack.c.0.s8 %v1533
          %v1535 = vperm.slane %v1529, %v1534
          %v1537 = vunpack.c.l.s4 1934713408
          %v1538 = vunpack.c.0.s8 %v1537
          %v1539 = vperm.slane %v1531, %v1538
          %v1540 = vrot.slane %v1535, 4
          %v1541 = vsel %vm1179, %v1540, %v1523
          %v1542 = vrot.slane %v1523, 4
          %v1543 = vsel %vm1179, %v1535, %v1542
          %v1544 = vrot.slane %v1539, 4
          %v1545 = vsel %vm1179, %v1544, %v1527
          %v1546 = vrot.slane %v1527, 4
          %v1547 = vsel %vm1179, %v1539, %v1546
          %v1548 = vpack.c.bf16 %v1541, %v1541
          %v1549 = vpack.c.bf16 %v1543, %v1543
          %v1550 = vpack.c.bf16 %v1545, %v1545
          %v1551 = vpack.c.bf16 %v1547, %v1547
          %vm1552 = vcmask 64512
          %v1554 = vsel %vm1552, %v1432, 0
          %v1557 = vsel %vm1552, %v1490, 0
          %1559 = vmatpush.bf16.xpose.msra.mxu0 0
          %1560 = vmatpush.bf16.xpose.msra.mxu0 0
          %1561 = vmatpush.bf16.xpose.msra.mxu0 0
          %1562 = vmatpush.bf16.xpose.msra.mxu0 0
          %1563 = vmatpush.bf16.xpose.msra.mxu0 0
          %1564 = vmatpush.bf16.xpose.msra.mxu0 0
          %1565 = vmatpush.bf16.xpose.msra.mxu0 0
          %1566 = vmatpush.bf16.xpose.msra.mxu0 %v1557
          %1567 = vmatmul.bf16.gmra.mxu0 %v1554
          %v1568 = vpop.f32.mrf.mxu0
          %v1569 = vadd.f32 0.0, %v1568
          %v1570 = vpop.f32.mrf.mxu0
          %1571 = vdwg.mxu0
          %v1573 = vsel %vm1552, %v1433, 0
          %v1576 = vsel %vm1552, %v1491, 0
          %1578 = vmatpush.bf16.xpose.msra.mxu0 0
          %1579 = vmatpush.bf16.xpose.msra.mxu0 0
          %1580 = vmatpush.bf16.xpose.msra.mxu0 0
          %1581 = vmatpush.bf16.xpose.msra.mxu0 0
          %1582 = vmatpush.bf16.xpose.msra.mxu0 0
          %1583 = vmatpush.bf16.xpose.msra.mxu0 0
          %1584 = vmatpush.bf16.xpose.msra.mxu0 0
          %1585 = vmatpush.bf16.xpose.msra.mxu0 %v1576
          %1586 = vmatmul.bf16.gmra.mxu0 %v1573
          %v1587 = vpop.f32.mrf.mxu0
          %v1588 = vadd.f32 0.0, %v1587
          %v1589 = vpop.f32.mrf.mxu0
          %1590 = vdwg.mxu0
          %v1592 = vsel %vm1552, %v1434, 0
          %v1595 = vsel %vm1552, %v1492, 0
          %1597 = vmatpush.bf16.xpose.msra.mxu0 0
          %1598 = vmatpush.bf16.xpose.msra.mxu0 0
          %1599 = vmatpush.bf16.xpose.msra.mxu0 0
          %1600 = vmatpush.bf16.xpose.msra.mxu0 0
          %1601 = vmatpush.bf16.xpose.msra.mxu0 0
          %1602 = vmatpush.bf16.xpose.msra.mxu0 0
          %1603 = vmatpush.bf16.xpose.msra.mxu0 0
          %1604 = vmatpush.bf16.xpose.msra.mxu0 %v1595
          %1605 = vmatmul.bf16.gmra.mxu0 %v1592
          %v1606 = vpop.f32.mrf.mxu0
          %v1607 = vadd.f32 0.0, %v1606
          %v1608 = vpop.f32.mrf.mxu0
          %1609 = vdwg.mxu0
          %v1611 = vsel %vm1552, %v1435, 0
          %v1614 = vsel %vm1552, %v1493, 0
          %1616 = vmatpush.bf16.xpose.msra.mxu0 0
          %1617 = vmatpush.bf16.xpose.msra.mxu0 0
          %1618 = vmatpush.bf16.xpose.msra.mxu0 0
          %1619 = vmatpush.bf16.xpose.msra.mxu0 0
          %1620 = vmatpush.bf16.xpose.msra.mxu0 0
          %1621 = vmatpush.bf16.xpose.msra.mxu0 0
          %1622 = vmatpush.bf16.xpose.msra.mxu0 0
          %1623 = vmatpush.bf16.xpose.msra.mxu0 %v1614
          %1624 = vmatmul.bf16.gmra.mxu0 %v1611
          %v1625 = vpop.f32.mrf.mxu0
          %v1626 = vadd.f32 0.0, %v1625
          %v1627 = vpop.f32.mrf.mxu0
          %1628 = vdwg.mxu0
          %v1629 = vld [vmem:[#allocation3] sm:$0xff]
          %v1630 = vadd.f32 %v1569, %v1629
          %v1631 = vadd.f32 %v1588, %v1629
          %v1632 = vadd.f32 %v1607, %v1629
          %v1633 = vadd.f32 %v1626, %v1629
          %v1634 = vsel %vm1552, %v1630, -inf
          %1635 = vmax.xlane.f32.xlu0 %v1634
          %v1636 = vpop.xlane.xlu0 %1635
          %v1637 = vsel %vm1552, %v1631, -inf
          %1638 = vmax.xlane.f32.xlu0 %v1637
          %v1639 = vpop.xlane.xlu0 %1638
          %v1640 = vsel %vm1552, %v1632, -inf
          %1641 = vmax.xlane.f32.xlu0 %v1640
          %v1642 = vpop.xlane.xlu0 %1641
          %v1643 = vsel %vm1552, %v1633, -inf
          %1644 = vmax.xlane.f32.xlu0 %v1643
          %v1645 = vpop.xlane.xlu0 %1644
          %v1646 = vsub.f32 %v1630, %v1636
          %v1647 = vsub.f32 %v1631, %v1639
          %v1648 = vsub.f32 %v1632, %v1642
          %v1649 = vsub.f32 %v1633, %v1645
          %v1650 = vmul.f32 %v1646, 1.442695
          %v1651 = vpow.pop %v1650
          %v1652 = vmul.f32 %v1647, 1.442695
          %v1653 = vpow.pop %v1652
          %v1654 = vmul.f32 %v1648, 1.442695
          %v1655 = vpow.pop %v1654
          %v1656 = vmul.f32 %v1649, 1.442695
          %v1657 = vpow.pop %v1656
          %v1658 = vsel %vm1552, %v1651, 0.0
          %1659 = vadd.xlane.f32.xlu0 %v1658
          %v1660 = vpop.xlane.xlu0 %1659
          %v1661 = vsel %vm1552, %v1653, 0.0
          %1662 = vadd.xlane.f32.xlu0 %v1661
          %v1663 = vpop.xlane.xlu0 %1662
          %v1664 = vsel %vm1552, %v1655, 0.0
          %1665 = vadd.xlane.f32.xlu0 %v1664
          %v1666 = vpop.xlane.xlu0 %1665
          %v1667 = vsel %vm1552, %v1657, 0.0
          %1668 = vadd.xlane.f32.xlu0 %v1667
          %v1669 = vpop.xlane.xlu0 %1668
          %v1670 = vrcp.pop %v1660
          %v1671 = vrcp.pop %v1663
          %v1672 = vrcp.pop %v1666
          %v1673 = vrcp.pop %v1669
          %v1674 = vmul.f32 %v1651, %v1670
          %v1675 = vmul.f32 %v1653, %v1671
          %v1676 = vmul.f32 %v1655, %v1672
          %v1677 = vmul.f32 %v1657, %v1673
          %v1678 = vpack.c.bf16 %v1674, %v1674
          %v1679 = vpack.c.bf16 %v1675, %v1675
          %v1680 = vpack.c.bf16 %v1676, %v1676
          %v1681 = vpack.c.bf16 %v1677, %v1677
          %v1683 = vsel %vm1552, %v1678, 0
          %vm1685 = vcmask 1043456
          %v1687 = vsel %vm1685, %v1548, 0
          %1689 = vmatpush.bf16.msra.mxu0 0
          %1690 = vmatpush.bf16.msra.mxu0 0
          %1691 = vmatpush.bf16.msra.mxu0 0
          %1692 = vmatpush.bf16.msra.mxu0 0
          %1693 = vmatpush.bf16.msra.mxu0 0
          %1694 = vmatpush.bf16.msra.mxu0 0
          %1695 = vmatpush.bf16.msra.mxu0 0
          %1696 = vmatpush.bf16.msra.mxu0 %v1687
          %1697 = vmatmul.bf16.gmra.mxu0 %v1683
          %v1698 = vpop.f32.mrf.mxu0
          %v1699 = vadd.f32 0.0, %v1698
          %v1700 = vpop.f32.mrf.mxu0
          %1701 = vdwg.mxu0
          %v1703 = vsel %vm1552, %v1679, 0
          %v1706 = vsel %vm1685, %v1549, 0
          %1708 = vmatpush.bf16.msra.mxu0 0
          %1709 = vmatpush.bf16.msra.mxu0 0
          %1710 = vmatpush.bf16.msra.mxu0 0
          %1711 = vmatpush.bf16.msra.mxu0 0
          %1712 = vmatpush.bf16.msra.mxu0 0
          %1713 = vmatpush.bf16.msra.mxu0 0
          %1714 = vmatpush.bf16.msra.mxu0 0
          %1715 = vmatpush.bf16.msra.mxu0 %v1706
          %1716 = vmatmul.bf16.gmra.mxu0 %v1703
          %v1717 = vpop.f32.mrf.mxu0
          %v1718 = vadd.f32 0.0, %v1717
          %v1719 = vpop.f32.mrf.mxu0
          %1720 = vdwg.mxu0
          %v1722 = vsel %vm1552, %v1680, 0
          %v1725 = vsel %vm1685, %v1550, 0
          %1727 = vmatpush.bf16.msra.mxu0 0
          %1728 = vmatpush.bf16.msra.mxu0 0
          %1729 = vmatpush.bf16.msra.mxu0 0
          %1730 = vmatpush.bf16.msra.mxu0 0
          %1731 = vmatpush.bf16.msra.mxu0 0
          %1732 = vmatpush.bf16.msra.mxu0 0
          %1733 = vmatpush.bf16.msra.mxu0 0
          %1734 = vmatpush.bf16.msra.mxu0 %v1725
          %1735 = vmatmul.bf16.gmra.mxu0 %v1722
          %v1736 = vpop.f32.mrf.mxu0
          %v1737 = vadd.f32 0.0, %v1736
          %v1738 = vpop.f32.mrf.mxu0
          %1739 = vdwg.mxu0
          %v1741 = vsel %vm1552, %v1681, 0
          %v1744 = vsel %vm1685, %v1551, 0
          %1746 = vmatpush.bf16.msra.mxu0 0
          %1747 = vmatpush.bf16.msra.mxu0 0
          %1748 = vmatpush.bf16.msra.mxu0 0
          %1749 = vmatpush.bf16.msra.mxu0 0
          %1750 = vmatpush.bf16.msra.mxu0 0
          %1751 = vmatpush.bf16.msra.mxu0 0
          %1752 = vmatpush.bf16.msra.mxu0 0
          %1753 = vmatpush.bf16.msra.mxu0 %v1744
          %1754 = vmatmul.bf16.gmra.mxu0 %v1741
          %v1755 = vpop.f32.mrf.mxu0
          %v1756 = vadd.f32 0.0, %v1755
          %v1757 = vpop.f32.mrf.mxu0
          %1758 = vdwg.mxu0
          %v1759 = vrot.slane %v1737, 4
          %v1760 = vsel %vm1179, %v1759, %v1699
          %v1761 = vrot.slane %v1699, 4
          %v1762 = vsel %vm1179, %v1737, %v1761
          %v1764 = vunpack.c.l.s4 1983009808
          %v1765 = vunpack.c.0.s8 %v1764
          %v1766 = vperm.slane %v1760, %v1765
          %v1768 = vunpack.c.l.s4 1983009808
          %v1769 = vunpack.c.0.s8 %v1768
          %v1770 = vperm.slane %v1762, %v1769
          %v1771 = vrot.slane %v1756, 4
          %v1772 = vsel %vm1179, %v1771, %v1718
          %v1773 = vrot.slane %v1718, 4
          %v1774 = vsel %vm1179, %v1756, %v1773
          %v1776 = vunpack.c.l.s4 1983009808
          %v1777 = vunpack.c.0.s8 %v1776
          %v1778 = vperm.slane %v1772, %v1777
          %v1780 = vunpack.c.l.s4 1983009808
          %v1781 = vunpack.c.0.s8 %v1780
          %v1782 = vperm.slane %v1774, %v1781
          %v1783 = vrot.slane %v1778, 4
          %v1784 = vsel %vm1179, %v1783, %v1766
          %v1785 = vrot.slane %v1766, 4
          %v1786 = vsel %vm1179, %v1778, %v1785
          %v1788 = vunpack.c.l.s4 1934713408
          %v1789 = vunpack.c.0.s8 %v1788
          %v1790 = vperm.slane %v1784, %v1789
          %v1792 = vunpack.c.l.s4 1934713408
          %v1793 = vunpack.c.0.s8 %v1792
          %v1794 = vperm.slane %v1786, %v1793
          %v1795 = vrot.slane %v1782, 4
          %v1796 = vsel %vm1179, %v1795, %v1770
          %v1797 = vrot.slane %v1770, 4
          %v1798 = vsel %vm1179, %v1782, %v1797
          %v1800 = vunpack.c.l.s4 1934713408
          %v1801 = vunpack.c.0.s8 %v1800
          %v1802 = vperm.slane %v1796, %v1801
          %v1804 = vunpack.c.l.s4 1934713408
          %v1805 = vunpack.c.0.s8 %v1804
          %v1806 = vperm.slane %v1798, %v1805
          %v1807 = vrot.slane %v1790, 4
          %v1808 = vsel %vm1179, 0.0, %v1807
          %v1809 = vrot.slane %v1794, 4
          %v1810 = vsel %vm1179, 0.0, %v1809
          %v1811 = vrot.slane %v1802, 4
          %v1812 = vsel %vm1179, 0.0, %v1811
          %v1813 = vrot.slane %v1806, 4
          %v1814 = vsel %vm1179, 0.0, %v1813
          %v1815 = vsel %vm1179, %v1809, %v1790
          %v1817 = vunpack.c.l.s4 1983009808
          %v1818 = vunpack.c.0.s8 %v1817
          %v1819 = vperm.slane %v1815, %v1818
          %v1820 = vrot.slane %v1810, 4
          %v1821 = vsel %vm1179, %v1820, %v1808
          %v1823 = vunpack.c.l.s4 1983009808
          %v1824 = vunpack.c.0.s8 %v1823
          %v1825 = vperm.slane %v1821, %v1824
          %v1826 = vsel %vm1179, %v1813, %v1802
          %v1828 = vunpack.c.l.s4 1983009808
          %v1829 = vunpack.c.0.s8 %v1828
          %v1830 = vperm.slane %v1826, %v1829
          %v1831 = vrot.slane %v1814, 4
          %v1832 = vsel %vm1179, %v1831, %v1812
          %v1834 = vunpack.c.l.s4 1983009808
          %v1835 = vunpack.c.0.s8 %v1834
          %v1836 = vperm.slane %v1832, %v1835
          %v1837 = vrot.slane %v1825, 4
          %v1838 = vsel %vm1179, %v1837, %v1819
          %v1839 = vrot.slane %v1819, 4
          %v1840 = vsel %vm1179, %v1825, %v1839
          %v1842 = vunpack.c.l.s4 1934713408
          %v1843 = vunpack.c.0.s8 %v1842
          %v1844 = vperm.slane %v1838, %v1843
          %v1846 = vunpack.c.l.s4 1934713408
          %v1847 = vunpack.c.0.s8 %v1846
          %v1848 = vperm.slane %v1840, %v1847
          %v1849 = vrot.slane %v1836, 4
          %v1850 = vsel %vm1179, %v1849, %v1830
          %v1851 = vrot.slane %v1830, 4
          %v1852 = vsel %vm1179, %v1836, %v1851
          %v1854 = vunpack.c.l.s4 1934713408
          %v1855 = vunpack.c.0.s8 %v1854
          %v1856 = vperm.slane %v1850, %v1855
          %v1858 = vunpack.c.l.s4 1934713408
          %v1859 = vunpack.c.0.s8 %v1858
          %v1860 = vperm.slane %v1852, %v1859
          %v1861 = vrot.slane %v1856, 4
          %v1862 = vsel %vm1179, %v1861, %v1844
          %v1863 = vrot.slane %v1844, 4
          %v1864 = vsel %vm1179, %v1856, %v1863
          %v1865 = vrot.slane %v1860, 4
          %v1866 = vsel %vm1179, %v1865, %v1848
          %v1867 = vrot.slane %v1848, 4
          %v1868 = vsel %vm1179, %v1860, %v1867
          %1870 = vrot.lane.b32.xlu0 %v1864, 8
          %v1871 = vpop.permute.xlu0 %1870
          %1874 = vrot.lane.b32.xlu0 %v1866, 16
          %v1875 = vpop.permute.xlu0 %1874
          %1878 = vrot.lane.b32.xlu0 %v1868, 24
          %v1879 = vpop.permute.xlu0 %1878
          %v1881 = vsel %vm1552, %v1862, %v1871
          %vm1882 = vcmask 130048
          %v1883 = vsel %vm1882, %v1881, %v1875
          %vm1884 = vcmask 195584
          %v1885 = vsel %vm1884, %v1883, %v1879
          %v1886 = vpack.c.bf16 %v1885, %v1885
          %v1887 = vld [vmem:[%s1009] sm:$0xf]
          %v1888 = vld [vmem:[%s1009 + $0x4] sm:$0xf]
          %v1889 = vld [vmem:[%s1009 + $0x8] sm:$0xf]
          %v1890 = vld [vmem:[%s1009 + $0xc] sm:$0xf]
          %v1891 = vld [vmem:[%s1016] sm:$0x1]
          %v1893 = vperm.slane %v1891, 0
          %v1899 = vunpack.c.l.b16 %v1887
          %v1900 = vunpack.c.l.b16 %v1888
          %v1901 = vunpack.c.l.b16 %v1889
          %v1902 = vunpack.c.l.b16 %v1890
          %v1903 = vpack.c.b16 %v1900, %v1899
          %v1904 = vpack.c.b16 %v1902, %v1901
          %v1908 = vsel %vm1092, %v1886, 0
          %1910 = vmatpush.bf16.msra.mxu0 0
          %1911 = vmatpush.bf16.msra.mxu0 0
          %1912 = vmatpush.bf16.msra.mxu0 0
          %1913 = vmatpush.bf16.msra.mxu0 0
          %1914 = vmatpush.bf16.msra.mxu0 0
          %1915 = vmatpush.bf16.msra.mxu0 0
          %1916 = vmatpush.bf16.msra.mxu0 %v1904
          %1917 = vmatpush.bf16.msra.mxu0 %v1903
          %1918 = vmatmul.bf16.gmra.mxu0 %v1908
          %v1919 = vpop.f32.mrf.mxu0
          %v1920 = vadd.f32 %v1893, %v1919
          %v1921 = vpop.f32.mrf.mxu0
          %1922 = vdwg.mxu0
          %v1923 = vadd.f32 %v1089, %v1920
          %v1924 = vld [vmem:[%s842] sm:$0x1]
          %v1925 = vld [vmem:[%s1025] sm:$0x1]
          %v1926 = vsel %vm1092, %v1923, 0.0
          %1927 = vadd.xlane.f32.xlu0 %v1926
          %v1928 = vpop.xlane.xlu0 %1927
          %v1929 = vmul.f32 %v1928, %v1102
          %v1930 = vsub.f32 %v1923, %v1929
          %v1931 = vmul.f32 %v1930, %v1930
          %v1932 = vsel %vm1092, %v1931, 0.0
          %1933 = vadd.xlane.f32.xlu0 %v1932
          %v1934 = vpop.xlane.xlu0 %1933
          %v1935 = vmul.f32 %v1934, %v1102
          %v1936 = vadd.f32 %v1935, 1e-05
          %v1937 = vrsqrt.pop %v1936
          %v1938 = vmul.f32 %v1937, %v1936
          %v1939 = vmul.f32 %v1938, %v1937
          %v1940 = vmul.f32 0.5, %v1939
          %v1941 = vsub.f32 1.5, %v1940
          %v1942 = vmul.f32 %v1937, %v1941
          %vm1943 = vweird.f32 %v1936
          %vm1944 = vweird.f32 %v1937
          %vm1945 = vmor %vm1943, %vm1944
          %v1946 = vsel %vm1945, %v1937, %v1942
          %v1947 = vmul.f32 %v1930, %v1946
          %v1949 = vperm.slane %v1924, 0
          %v1951 = vmul.f32 %v1947, %v1949
          %v1953 = vperm.slane %v1925, 0
          %v1955 = vadd.f32 %v1951, %v1953
          %v1956 = vpack.c.bf16 %v1955, %v1955
          %v1957 = vld [vmem:[%s1034] sm:$0xf]
          %v1958 = vld [vmem:[%s1034 + $0x4] sm:$0xf]
          %v1959 = vld [vmem:[%s1034 + $0x8] sm:$0xf]
          %v1960 = vld [vmem:[%s1034 + $0xc] sm:$0xf]
          %v1961 = vld [vmem:[%s1041] sm:$0x1]
          %v1963 = vperm.slane %v1961, 0
          %v1969 = vunpack.c.l.b16 %v1957
          %v1970 = vunpack.c.l.b16 %v1958
          %v1971 = vunpack.c.l.b16 %v1959
          %v1972 = vunpack.c.l.b16 %v1960
          %v1973 = vpack.c.b16 %v1970, %v1969
          %v1974 = vpack.c.b16 %v1972, %v1971
          %v1978 = vsel %vm1092, %v1956, 0
          %1980 = vmatpush.bf16.msra.mxu0 0
          %1981 = vmatpush.bf16.msra.mxu0 0
          %1982 = vmatpush.bf16.msra.mxu0 0
          %1983 = vmatpush.bf16.msra.mxu0 0
          %1984 = vmatpush.bf16.msra.mxu0 0
          %1985 = vmatpush.bf16.msra.mxu0 0
          %1986 = vmatpush.bf16.msra.mxu0 %v1974
          %1987 = vmatpush.bf16.msra.mxu0 %v1973
          %1988 = vmatmul.bf16.gmra.mxu0 %v1978
          %v1989 = vpop.f32.mrf.mxu0
          %v1990 = vadd.f32 %v1963, %v1989
          %v1991 = vpop.f32.mrf.mxu0
          %1992 = vdwg.mxu0
          %v1993 = vmul.f32 %v1990, 0.5
          %v1994 = vmul.f32 %v1990, %v1990
          %v1995 = vmul.f32 %v1994, %v1990
          %v1996 = vmul.f32 %v1995, 0.044715
          %v1997 = vadd.f32 %v1990, %v1996
          %v1998 = vmul.f32 %v1997, 0.7978846
          %v1999 = vtanh.pop %v1998
          %v2000 = vadd.f32 %v1999, 1.0
          %v2001 = vmul.f32 %v1993, %v2000
          %v2002 = vpack.c.bf16 %v2001, %v2001
          %v2003 = vld [vmem:[%s1050] sm:$0xf]
          %v2004 = vld [vmem:[%s1050 + $0x4] sm:$0xf]
          %v2005 = vld [vmem:[%s1050 + $0x8] sm:$0xf]
          %v2006 = vld [vmem:[%s1050 + $0xc] sm:$0xf]
          %v2007 = vld [vmem:[%s1050 + $0x10] sm:$0xf]
          %v2008 = vld [vmem:[%s1050 + $0x14] sm:$0xf]
          %v2009 = vld [vmem:[%s1050 + $0x18] sm:$0xf]
          %v2010 = vld [vmem:[%s1050 + $0x1c] sm:$0xf]
          %v2011 = vld [vmem:[%s1057] sm:$0x1]
          %v2013 = vperm.slane %v2011, 0
          %v2023 = vunpack.c.l.b16 %v2003
          %v2024 = vunpack.c.l.b16 %v2004
          %v2025 = vunpack.c.l.b16 %v2005
          %v2026 = vunpack.c.l.b16 %v2006
          %v2027 = vunpack.c.l.b16 %v2007
          %v2028 = vunpack.c.l.b16 %v2008
          %v2029 = vunpack.c.l.b16 %v2009
          %v2030 = vunpack.c.l.b16 %v2010
          %v2031 = vpack.c.b16 %v2024, %v2023
          %v2032 = vpack.c.b16 %v2026, %v2025
          %v2033 = vpack.c.b16 %v2028, %v2027
          %v2034 = vpack.c.b16 %v2030, %v2029
          %vm2039 = vcmask 523264
          %v2041 = vsel %vm2039, %v2002, 0
          %2043 = vmatpush.bf16.msra.mxu0 0
          %2044 = vmatpush.bf16.msra.mxu0 0
          %2045 = vmatpush.bf16.msra.mxu0 0
          %2046 = vmatpush.bf16.msra.mxu0 0
          %2047 = vmatpush.bf16.msra.mxu0 %v2034
          %2048 = vmatpush.bf16.msra.mxu0 %v2033
          %2049 = vmatpush.bf16.msra.mxu0 %v2032
          %2050 = vmatpush.bf16.msra.mxu0 %v2031
          %2051 = vmatmul.bf16.gmra.mxu0 %v2041
          %v2052 = vpop.f32.mrf.mxu0
          %v2053 = vadd.f32 %v2013, %v2052
          %v2054 = vpop.f32.mrf.mxu0
          %2055 = vdwg.mxu0
          %v2056 = vadd.f32 %v1923, %v2053
          %2057 = vst.msk [vmem:[#allocation2] sm:$0xff] %vm1092, %v2056
          %p2058 = scmp.eq.s32.totalorder %s45, 1
          // Predicated region
          $region117: #{tpu_custom_call.1} parent=115 // pred_check
            %p2059 = pneg %p2058
          $region118: #{tpu_custom_call.1} parent=115 // pred_check_branch
            %2061 = sbr.rel (%p2059) target = $region120
          $region119: #{tpu_custom_call.1} parent=115 // pred_region
            %v2062 = vld [vmem:[%s2] sm:$0x1]
            %v2063 = vld [vmem:[#allocation9] sm:$0x1]
            %v2064 = vsel %vm1092, %v2056, 0.0
            %2065 = vadd.xlane.f32.xlu0 %v2064
            %v2066 = vpop.xlane.xlu0 %2065
            %v2067 = vmul.f32 %v2066, %v1102
            %v2068 = vsub.f32 %v2056, %v2067
            %v2069 = vmul.f32 %v2068, %v2068
            %v2070 = vsel %vm1092, %v2069, 0.0
            %2071 = vadd.xlane.f32.xlu0 %v2070
            %v2072 = vpop.xlane.xlu0 %2071
            %v2073 = vmul.f32 %v2072, %v1102
            %v2074 = vadd.f32 %v2073, 1e-05
            %v2075 = vrsqrt.pop %v2074
            %v2076 = vmul.f32 %v2075, %v2074
            %v2077 = vmul.f32 %v2076, %v2075
            %v2078 = vmul.f32 0.5, %v2077
            %v2079 = vsub.f32 1.5, %v2078
            %v2080 = vmul.f32 %v2075, %v2079
            %vm2081 = vweird.f32 %v2074
            %vm2082 = vweird.f32 %v2075
            %vm2083 = vmor %vm2081, %vm2082
            %v2084 = vsel %vm2083, %v2075, %v2080
            %v2085 = vmul.f32 %v2068, %v2084
            %v2087 = vperm.slane %v2062, 0
            %v2089 = vmul.f32 %v2085, %v2087
            %v2091 = vperm.slane %v2063, 0
            %v2093 = vadd.f32 %v2089, %v2091
            %2094 = vst.msk [vmem:[#allocation2] sm:$0xff] %vm1092, %v2093
          $region120: #{tpu_custom_call.1} parent=115 // pred_fallthru
            _
        $region116: #{tpu_custom_call.1} parent=87 // pred_fallthru
          _
        %p2095 = scmp.ge.s32.totalorder %s45, 2
        // Predicated region
        $region121: #{tpu_custom_call.1} parent=87 // pred_check
          %p2096 = pneg %p2095
        $region122: #{tpu_custom_call.1} parent=87 // pred_check_branch
          %2098 = sbr.rel (%p2096) target = $region124
        $region123: #{tpu_custom_call.1} parent=87 // pred_region
          %v2099 = vld [vmem:[#allocation2] sm:$0xff]
          %v2100 = vpack.c.bf16 %v2099, %v2099
          %v2101 = vld [vmem:[%s833] sm:$0xf]
          %v2102 = vld [vmem:[%s833 + $0x4] sm:$0xf]
          %v2103 = vld [vmem:[%s833 + $0x8] sm:$0xf]
          %v2104 = vld [vmem:[%s833 + $0xc] sm:$0xf]
          %v2109 = vunpack.c.l.b16 %v2101
          %v2110 = vunpack.c.l.b16 %v2102
          %v2111 = vunpack.c.l.b16 %v2103
          %v2112 = vunpack.c.l.b16 %v2104
          %v2113 = vpack.c.b16 %v2110, %v2109
          %v2114 = vpack.c.b16 %v2112, %v2111
          %vm2117 = vcmask 261120
          %v2119 = vsel %vm2117, %v2100, 0
          %2121 = vmatpush.bf16.msra.mxu0 0
          %2122 = vmatpush.bf16.msra.mxu0 0
          %2123 = vmatpush.bf16.msra.mxu0 0
          %2124 = vmatpush.bf16.msra.mxu0 0
          %2125 = vmatpush.bf16.msra.mxu0 0
          %2126 = vmatpush.bf16.msra.mxu0 0
          %2127 = vmatpush.bf16.msra.mxu0 %v2114
          %2128 = vmatpush.bf16.msra.mxu0 %v2113
          %2129 = vmatmul.bf16.gmra.mxu0 %v2119
          %v2130 = vpop.f32.mrf.mxu0
          %v2131 = vadd.f32 0.0, %v2130
          %v2132 = vpop.f32.mrf.mxu0
          %2133 = vdwg.mxu0
          %2134 = vst [vmem:[%s969] sm:$0xff] %v2131
        $region124: #{tpu_custom_call.1} parent=87 // pred_fallthru
          _
        %s2135 = sand.u32 %s554, 1
        %s2136 = scalar_lea.sflag [#allocation6], %s2135
        %s2137 = sand.u32 %s554, 1
        %s2138 = smul.addr %s2137, 8
        %s2139 = scalar_lea.vmem [#allocation13], %s2138
        // Predicated region
        $region125: #{tpu_custom_call.1} parent=87 // pred_check
          %p2140 = pneg %p564
        $region126: #{tpu_custom_call.1} parent=87 // pred_check_branch
          %2142 = sbr.rel (%p2140) target = $region128
        $region127: #{tpu_custom_call.1} parent=87 // pred_region
          %s2143 = ssub.s32 %s45, 2
          %p2144 = scmp.gt.s32.totalorder %s2143, 0
          %s2145 = scalar_select %p2144, %s2143, 0
          %2147 = vsyncadd %s2136, 0
          %s2148 = sadd.s32 %s2145, %s44
          %s2149 = smul.addr %s2148, 8
          %s2150 = scalar_lea.hbm %s17, %s2149
          %s2152 = sshll.u32 %s2139, 4
          %s2153 = int_to_ptr.vmem [resolvable:$true] %s2152
          %s2154 = sshll.u32 %s2150, 4
          %s2155 = int_to_ptr.hbm [resolvable:$true] %s2154
          %2157 = dma.vmem_to_hbm [thread:$0]  %s2153, 128, %s2155, %s2136
        $region128: #{tpu_custom_call.1} parent=87 // pred_fallthru
          _
      $region88: #{tpu_custom_call.1} parent=5 // pred_fallthru
        _
      %p2158 = scmp.le.s32.totalorder 2, %s35
      // Predicated region
      $region129: #{tpu_custom_call.1} parent=5 // pred_check
        %p2159 = pneg %p2158
      $region130: #{tpu_custom_call.1} parent=5 // pred_check_branch
        %2161 = sbr.rel (%p2159) target = $region132
      $region131: #{tpu_custom_call.1} parent=5 // pred_region
        %s2162 = ssub.s32 %s35, 2
        // Predicated region
        $region133: #{tpu_custom_call.1} parent=131 // pred_check
          %p2163 = pneg %p570
        $region134: #{tpu_custom_call.1} parent=131 // pred_check_branch
          %2165 = sbr.rel (%p2163) target = $region136
        $region135: #{tpu_custom_call.1} parent=131 // pred_region
          %s2166 = sand.u32 %s555, 1
          %s2167 = scalar_lea.sflag [#allocation6], %s2166
          %s2168 = sand.u32 %s555, 1
          %s2169 = smul.addr %s2168, 8
          %s2170 = scalar_lea.vmem [#allocation13], %s2169
          %2172 = dma.done %s2167, 128
        $region136: #{tpu_custom_call.1} parent=131 // pred_fallthru
          _
      $region132: #{tpu_custom_call.1} parent=5 // pred_fallthru
        _
    $region6: #{tpu_custom_call.1} parent=1 // loop_footer
      %s39 = sadd.s32 1, %s35
    $region7: #{tpu_custom_call.1} parent=1 // loop_footer_branch
      %34 = sbr.rel target = $region3
    $region8: #{tpu_custom_call.1} parent=1 // loop_exit
      _
    %2173 = vsyncpa [#allocation5], 1
    %s2174 = scalar_lea.sflag [#allocation5], 1
    %2175 = vsyncpa %s2174, 1
    %2176 = vsyncpa [#allocation8], 1
    %s2177 = scalar_lea.sflag [#allocation8], 1
    %2178 = vsyncpa %s2177, 1
    %2179 = vsyncpa [#allocation11], 1
    %s2180 = scalar_lea.sflag [#allocation11], 1
    %2181 = vsyncpa %s2180, 1
    %2182 = vsyncpa [#allocation6], 1
    %s2183 = scalar_lea.sflag [#allocation6], 1
    %2184 = vsyncpa %s2183, 1

</llo_original>
